<compile_context>
chip_gen: v6e
topology: v6e:2x2x1
jax: 0.10.0
libtpu: 0.0.40
codegen_flags: <defaults>
</compile_context>

<pallas_src>
import functools

import jax
import jax.numpy as jnp
from jax.experimental import pallas as pl
from jax.experimental.pallas import tpu as pltpu

INPUT_DIM = 16
HIDDEN_DIM = 32
OUTPUT_DIM = 16
BATCH = 2
SEQ = 8

SUBLANE = 8      # batch rows padded to this
OUT_PAD = 128    # output columns padded to one full lane tile

# (pytorch gate index, fused fwd-block index, pre-scale)
# pytorch per-direction gate order: 0=i, 1=f, 2=g, 3=o.
# fused column blocks (width H each): [i_f,i_r, f_f,f_r, o_f,o_r, g_f,g_r]
# sigmoid gates (i,f,o) pre-scaled by 0.5 so sigmoid(z)=0.5*tanh(z/2)+0.5 needs
# only one tanh over the whole gate slab in the kernel.
_GATE_PACK = ((0, 0, 0.5), (1, 2, 0.5), (3, 4, 0.5), (2, 6, 1.0))


# ---------------------------------------------------------------------------
# The single fused kernel for the whole forward pass
# ---------------------------------------------------------------------------
def _rnnocr_kernel(xaug_ref, w1_ref, b1_ref, whh1_ref,
                   a2_ref, c2_ref, b2_ref, whh2_ref,
                   woa_ref, wob_ref, bo_ref, out_ref, *, T, BP, H):
    TH = 2 * H

    def bilstm(pre_all, whh):
        """Fused fwd+bwd recurrence.

        pre_all: (T*BP, 8H) hoisted input projection, already direction-routed
        and 0.5-prescaled on the sigmoid gate columns.
        Returns the list of per-step hidden slabs h[s] = [h_fwd(s) | h_bwd(T-1-s)].
        """
        h = jnp.zeros((BP, TH), jnp.float32)     # [h_fwd | h_bwd]
        c = jnp.zeros((BP, TH), jnp.float32)
        hs = []
        for s in range(T):                       # static -> fully unrolled
            gates = (pre_all[s * BP:(s + 1) * BP, :]
                     + jnp.dot(h, whh, preferred_element_type=jnp.float32))
            t = jnp.tanh(gates)                  # ONE EUP dispatch for all gates
            sg = 0.5 * t + 0.5                   # == sigmoid(z) on i/f/o slabs
            i_g = sg[:, 0 * TH:1 * TH]
            f_g = sg[:, 1 * TH:2 * TH]
            o_g = sg[:, 2 * TH:3 * TH]
            g_g = t[:, 3 * TH:4 * TH]
            c = f_g * c + i_g * g_g
            h = o_g * jnp.tanh(c)
            hs.append(h)
        return hs

    # ---- layer 1: hoisted input projection for both directions -------------
    # xaug row (t,b) = [x[t,b] | x[T-1-t,b]]; w1 routes fwd/bwd gate columns.
    pre1 = (jnp.dot(xaug_ref[...], w1_ref[...], preferred_element_type=jnp.float32)
            + b1_ref[...])                                        # (T*BP, 8H)
    hs1 = bilstm(pre1, whh1_ref[...])
    h1 = jnp.concatenate(hs1, axis=0)                             # (T*BP, 2H)
    h1r = jnp.concatenate(hs1[::-1], axis=0)                      # time-reversed

    # ---- layer 2: Linear1 folded into the input projection -----------------
    pre2 = (jnp.dot(h1, a2_ref[...], preferred_element_type=jnp.float32)
            + jnp.dot(h1r, c2_ref[...], preferred_element_type=jnp.float32)
            + b2_ref[...])                                        # (T*BP, 8H)
    hs2 = bilstm(pre2, whh2_ref[...])
    h2 = jnp.concatenate(hs2, axis=0)
    h2r = jnp.concatenate(hs2[::-1], axis=0)

    # ---- output projection (Linear2), lane-dense 128-wide ------------------
    out = (jnp.dot(h2, woa_ref[...], preferred_element_type=jnp.float32)
           + jnp.dot(h2r, wob_ref[...], preferred_element_type=jnp.float32)
           + bo_ref[...])                                         # (T*BP, 128)
    out_ref[...] = out.astype(out_ref.dtype)


# ---------------------------------------------------------------------------
# Wrapper
# ---------------------------------------------------------------------------
def rnnocr_forward(params, x):
    """x: (B, T, inputDim) batch-first. Returns (T, B, outputDim)."""
    B, T, D = x.shape
    H = HIDDEN_DIM
    BP = max(SUBLANE, ((B + SUBLANE - 1) // SUBLANE) * SUBLANE)

    # Time-major, batch padded to the sublane tile, augmented with the
    # time-reversed copy so both directions' input projections are one matmul.
    x_tm = jnp.transpose(x, (1, 0, 2)).astype(jnp.float32)         # (T, B, D)
    x_tm = jnp.pad(x_tm, ((0, 0), (0, BP - B), (0, 0)))            # (T, BP, D)
    x_aug = jnp.concatenate([x_tm, x_tm[::-1]], axis=-1)           # (T, BP, 2D)
    x_aug = x_aug.reshape(T * BP, 2 * D)

    args = (x_aug,
            params["w1"], params["b1"], params["whh1"],
            params["a2"], params["c2"], params["b2"], params["whh2"],
            params["woa"], params["wob"], params["bo"])

    out = pl.pallas_call(
        functools.partial(_rnnocr_kernel, T=T, BP=BP, H=H),
        out_shape=jax.ShapeDtypeStruct((T * BP, OUT_PAD), jnp.float32),
        in_specs=[pl.BlockSpec(memory_space=pltpu.MemorySpace.VMEM)] * len(args),
        out_specs=pl.BlockSpec(memory_space=pltpu.MemorySpace.VMEM),
    )(*args)
    # Strip batch / lane padding; equals the reference's .transpose(0, 1).
    return out.reshape(T, BP, OUT_PAD)[:, :B, :OUTPUT_DIM]


# ---------------------------------------------------------------------------
# Parameter init (deterministic, synthetic — PyTorch nn.LSTM / nn.Linear
# semantics) packed ONCE at init time into the fused kernel layout.
# ---------------------------------------------------------------------------
def _pack_params(l1f, l1r, l2f, l2r, lin1, lin2, D, H, out_dim):
    G = 8 * H
    wih1f, whh1f, b1f = l1f
    wih1r, whh1r, b1r = l1r
    wih2f, whh2f, b2f = l2f
    wih2r, whh2r, b2r = l2r
    wl1, bl1 = lin1
    wl2, bl2 = lin2

    # Fold Linear1 into layer-2's input projection (exact: emb is never output).
    wc_f = wl1 @ wih2f                 # (2H, 4H)
    wc_r = wl1 @ wih2r
    bc_f = bl1 @ wih2f + b2f           # (1, 4H)
    bc_r = bl1 @ wih2r + b2r

    w1   = jnp.zeros((2 * D, G), jnp.float32)   # multiplies [x(t) | x(T-1-t)]
    b1   = jnp.zeros((1, G), jnp.float32)
    whh1 = jnp.zeros((2 * H, G), jnp.float32)
    a2   = jnp.zeros((2 * H, G), jnp.float32)   # multiplies H1  (step-stacked h)
    c2   = jnp.zeros((2 * H, G), jnp.float32)   # multiplies H1r (time-reversed)
    b2   = jnp.zeros((1, G), jnp.float32)
    whh2 = jnp.zeros((2 * H, G), jnp.float32)

    for k, blk, sc in _GATE_PACK:
        src = slice(k * H, (k + 1) * H)
        cf = slice(blk * H, (blk + 1) * H)          # fwd-direction column block
        cr = slice((blk + 1) * H, (blk + 2) * H)    # bwd-direction column block
        # layer 1 input projection: fwd dir reads x(t) (rows :D),
        # bwd dir reads x(T-1-t) (rows D:).
        w1 = w1.at[:D, cf].set(sc * wih1f[:, src])
        w1 = w1.at[D:, cr].set(sc * wih1r[:, src])
        b1 = b1.at[:, cf].set(sc * b1f[:, src])
        b1 = b1.at[:, cr].set(sc * b1r[:, src])
        # layer 1 recurrence: block-diagonal over direction.
        whh1 = whh1.at[:H, cf].set(sc * whh1f[:, src])
        whh1 = whh1.at[H:, cr].set(sc * whh1r[:, src])
        # layer 2 input projection from layer-1 hidden slabs:
        #   lstmOut1[t]     = [H1[t][:, :H] | H1r[t][:, H:]]  (fwd-dir input)
        #   lstmOut1[T-1-t] = [H1r[t][:, :H] | H1[t][:, H:]]  (bwd-dir input)
        a2 = a2.at[:H, cf].set(sc * wc_f[:H, src])
        c2 = c2.at[H:, cf].set(sc * wc_f[H:, src])
        c2 = c2.at[:H, cr].set(sc * wc_r[:H, src])
        a2 = a2.at[H:, cr].set(sc * wc_r[H:, src])
        b2 = b2.at[:, cf].set(sc * bc_f[:, src])
        b2 = b2.at[:, cr].set(sc * bc_r[:, src])
        # layer 2 recurrence.
        whh2 = whh2.at[:H, cf].set(sc * whh2f[:, src])
        whh2 = whh2.at[H:, cr].set(sc * whh2r[:, src])

    # Output projection (Linear2), lane-padded to 128 columns.
    #   lstmOut2[t] = [H2[t][:, :H] | H2r[t][:, H:]]
    woa = jnp.zeros((2 * H, OUT_PAD), jnp.float32)
    wob = jnp.zeros((2 * H, OUT_PAD), jnp.float32)
    bo = jnp.zeros((1, OUT_PAD), jnp.float32)
    woa = woa.at[:H, :out_dim].set(wl2[:H, :])
    wob = wob.at[H:, :out_dim].set(wl2[H:, :])
    bo = bo.at[:, :out_dim].set(bl2)

    return dict(w1=w1, b1=b1, whh1=whh1, a2=a2, c2=c2, b2=b2, whh2=whh2,
                woa=woa, wob=wob, bo=bo)


def init_params(key, input_dim, hidden_dim, output_dim):
    H = hidden_dim

    def uni(k, shape, scale):
        return jax.random.uniform(k, shape, jnp.float32, -scale, scale)

    keys = iter(jax.random.split(key, 32))
    s_lstm = 1.0 / float(H) ** 0.5
    s_lin = 1.0 / float(2 * H) ** 0.5

    def lstm_dir(in_dim):
        wih = uni(next(keys), (in_dim, 4 * H), s_lstm)   # W_ih^T, gates i,f,g,o
        whh = uni(next(keys), (H, 4 * H), s_lstm)        # W_hh^T
        b_ih = uni(next(keys), (1, 4 * H), s_lstm)
        b_hh = uni(next(keys), (1, 4 * H), s_lstm)
        return wih, whh, b_ih + b_hh

    l1f, l1r = lstm_dir(input_dim), lstm_dir(input_dim)
    l2f, l2r = lstm_dir(hidden_dim), lstm_dir(hidden_dim)
    lin1 = (uni(next(keys), (2 * H, hidden_dim), s_lin),
            uni(next(keys), (1, hidden_dim), s_lin))
    lin2 = (uni(next(keys), (2 * H, output_dim), s_lin),
            uni(next(keys), (1, output_dim), s_lin))
    return _pack_params(l1f, l1r, l2f, l2r, lin1, lin2,
                        input_dim, H, output_dim)


if __name__ == "__main__":
    key = jax.random.PRNGKey(0)
    pkey, xkey = jax.random.split(key)
    params = init_params(pkey, INPUT_DIM, HIDDEN_DIM, OUTPUT_DIM)
    x = jax.random.normal(xkey, (BATCH, SEQ, INPUT_DIM), jnp.float32)

    out = jax.jit(rnnocr_forward)(params, x)
    out = jax.block_until_ready(out)
    assert out.shape == (SEQ, BATCH, OUTPUT_DIM), out.shape
    assert bool(jnp.all(jnp.isfinite(out)))
    print("KERNEL_OK")
</pallas_src>

<mosaic_0001>
module attributes {stable_mosaic.version = 11 : i64} {
  func.func @_rnnocr_kernel(%arg0: memref<64x32xf32, #tpu.memory_space<vmem>>, %arg1: memref<32x256xf32, #tpu.memory_space<vmem>>, %arg2: memref<1x256xf32, #tpu.memory_space<vmem>>, %arg3: memref<64x256xf32, #tpu.memory_space<vmem>>, %arg4: memref<64x256xf32, #tpu.memory_space<vmem>>, %arg5: memref<64x256xf32, #tpu.memory_space<vmem>>, %arg6: memref<1x256xf32, #tpu.memory_space<vmem>>, %arg7: memref<64x256xf32, #tpu.memory_space<vmem>>, %arg8: memref<64x128xf32, #tpu.memory_space<vmem>>, %arg9: memref<64x128xf32, #tpu.memory_space<vmem>>, %arg10: memref<1x128xf32, #tpu.memory_space<vmem>>, %arg11: memref<64x128xf32, #tpu.memory_space<vmem>>) attributes {dimension_semantics = [], scalar_prefetch = 0 : i64, scratch_operands = 0 : i64, tpu.core_type = #tpu.core_type<tc>} {
    %c0 = arith.constant 0 : index
    %c0_0 = arith.constant 0 : index
    %0 = vector.load %arg0[%c0, %c0_0] : memref<64x32xf32, #tpu.memory_space<vmem>>, vector<64x32xf32>
    %c0_1 = arith.constant 0 : index
    %c0_2 = arith.constant 0 : index
    %1 = vector.load %arg1[%c0_1, %c0_2] : memref<32x256xf32, #tpu.memory_space<vmem>>, vector<32x256xf32>
    %cst = arith.constant dense<0.000000e+00> : vector<64x256xf32>
    %2 = tpu.matmul %0, %1, %cst {dimension_numbers = #tpu.dot_dimension_numbers<[1], [0], [0], [1], [0, 0, 1, 1], [], []>} : vector<64x32xf32>, vector<32x256xf32>, vector<64x256xf32> -> vector<64x256xf32>
    %c0_3 = arith.constant 0 : index
    %c0_4 = arith.constant 0 : index
    %3 = vector.load %arg2[%c0_3, %c0_4] : memref<1x256xf32, #tpu.memory_space<vmem>>, vector<1x256xf32>
    %4 = vector.broadcast %3 : vector<1x256xf32> to vector<64x256xf32>
    %5 = arith.addf %2, %4 : vector<64x256xf32>
    %c0_5 = arith.constant 0 : index
    %c0_6 = arith.constant 0 : index
    %6 = vector.load %arg3[%c0_5, %c0_6] : memref<64x256xf32, #tpu.memory_space<vmem>>, vector<64x256xf32>
    %cst_7 = arith.constant 0.000000e+00 : f32
    %7 = vector.broadcast %cst_7 : f32 to vector<8x64xf32>
    %cst_8 = arith.constant 0.000000e+00 : f32
    %8 = vector.broadcast %cst_8 : f32 to vector<8x64xf32>
    %9 = vector.extract_strided_slice %5 {offsets = [0, 0], sizes = [8, 256], strides = [1, 1]} : vector<64x256xf32> to vector<8x256xf32>
    %cst_9 = arith.constant dense<0.000000e+00> : vector<8x256xf32>
    %10 = tpu.matmul %7, %6, %cst_9 {dimension_numbers = #tpu.dot_dimension_numbers<[1], [0], [0], [1], [0, 0, 1, 1], [], []>} : vector<8x64xf32>, vector<64x256xf32>, vector<8x256xf32> -> vector<8x256xf32>
    %11 = arith.addf %9, %10 : vector<8x256xf32>
    %12 = math.tanh %11 : vector<8x256xf32>
    %cst_10 = arith.constant 5.000000e-01 : f32
    %13 = vector.broadcast %cst_10 : f32 to vector<8x256xf32>
    %14 = arith.mulf %13, %12 : vector<8x256xf32>
    %cst_11 = arith.constant 5.000000e-01 : f32
    %15 = vector.broadcast %cst_11 : f32 to vector<8x256xf32>
    %16 = arith.addf %14, %15 : vector<8x256xf32>
    %17 = vector.extract_strided_slice %16 {offsets = [0, 0], sizes = [8, 64], strides = [1, 1]} : vector<8x256xf32> to vector<8x64xf32>
    %18 = vector.extract_strided_slice %16 {offsets = [0, 64], sizes = [8, 64], strides = [1, 1]} : vector<8x256xf32> to vector<8x64xf32>
    %19 = vector.extract_strided_slice %16 {offsets = [0, 128], sizes = [8, 64], strides = [1, 1]} : vector<8x256xf32> to vector<8x64xf32>
    %20 = vector.extract_strided_slice %12 {offsets = [0, 192], sizes = [8, 64], strides = [1, 1]} : vector<8x256xf32> to vector<8x64xf32>
    %21 = arith.mulf %18, %8 : vector<8x64xf32>
    %22 = arith.mulf %17, %20 : vector<8x64xf32>
    %23 = arith.addf %21, %22 : vector<8x64xf32>
    %24 = math.tanh %23 : vector<8x64xf32>
    %25 = arith.mulf %19, %24 : vector<8x64xf32>
    %26 = vector.extract_strided_slice %5 {offsets = [8, 0], sizes = [8, 256], strides = [1, 1]} : vector<64x256xf32> to vector<8x256xf32>
    %cst_12 = arith.constant dense<0.000000e+00> : vector<8x256xf32>
    %27 = tpu.matmul %25, %6, %cst_12 {dimension_numbers = #tpu.dot_dimension_numbers<[1], [0], [0], [1], [0, 0, 1, 1], [], []>} : vector<8x64xf32>, vector<64x256xf32>, vector<8x256xf32> -> vector<8x256xf32>
    %28 = arith.addf %26, %27 : vector<8x256xf32>
    %29 = math.tanh %28 : vector<8x256xf32>
    %cst_13 = arith.constant 5.000000e-01 : f32
    %30 = vector.broadcast %cst_13 : f32 to vector<8x256xf32>
    %31 = arith.mulf %30, %29 : vector<8x256xf32>
    %cst_14 = arith.constant 5.000000e-01 : f32
    %32 = vector.broadcast %cst_14 : f32 to vector<8x256xf32>
    %33 = arith.addf %31, %32 : vector<8x256xf32>
    %34 = vector.extract_strided_slice %33 {offsets = [0, 0], sizes = [8, 64], strides = [1, 1]} : vector<8x256xf32> to vector<8x64xf32>
    %35 = vector.extract_strided_slice %33 {offsets = [0, 64], sizes = [8, 64], strides = [1, 1]} : vector<8x256xf32> to vector<8x64xf32>
    %36 = vector.extract_strided_slice %33 {offsets = [0, 128], sizes = [8, 64], strides = [1, 1]} : vector<8x256xf32> to vector<8x64xf32>
    %37 = vector.extract_strided_slice %29 {offsets = [0, 192], sizes = [8, 64], strides = [1, 1]} : vector<8x256xf32> to vector<8x64xf32>
    %38 = arith.mulf %35, %23 : vector<8x64xf32>
    %39 = arith.mulf %34, %37 : vector<8x64xf32>
    %40 = arith.addf %38, %39 : vector<8x64xf32>
    %41 = math.tanh %40 : vector<8x64xf32>
    %42 = arith.mulf %36, %41 : vector<8x64xf32>
    %43 = vector.extract_strided_slice %5 {offsets = [16, 0], sizes = [8, 256], strides = [1, 1]} : vector<64x256xf32> to vector<8x256xf32>
    %cst_15 = arith.constant dense<0.000000e+00> : vector<8x256xf32>
    %44 = tpu.matmul %42, %6, %cst_15 {dimension_numbers = #tpu.dot_dimension_numbers<[1], [0], [0], [1], [0, 0, 1, 1], [], []>} : vector<8x64xf32>, vector<64x256xf32>, vector<8x256xf32> -> vector<8x256xf32>
    %45 = arith.addf %43, %44 : vector<8x256xf32>
    %46 = math.tanh %45 : vector<8x256xf32>
    %cst_16 = arith.constant 5.000000e-01 : f32
    %47 = vector.broadcast %cst_16 : f32 to vector<8x256xf32>
    %48 = arith.mulf %47, %46 : vector<8x256xf32>
    %cst_17 = arith.constant 5.000000e-01 : f32
    %49 = vector.broadcast %cst_17 : f32 to vector<8x256xf32>
    %50 = arith.addf %48, %49 : vector<8x256xf32>
    %51 = vector.extract_strided_slice %50 {offsets = [0, 0], sizes = [8, 64], strides = [1, 1]} : vector<8x256xf32> to vector<8x64xf32>
    %52 = vector.extract_strided_slice %50 {offsets = [0, 64], sizes = [8, 64], strides = [1, 1]} : vector<8x256xf32> to vector<8x64xf32>
    %53 = vector.extract_strided_slice %50 {offsets = [0, 128], sizes = [8, 64], strides = [1, 1]} : vector<8x256xf32> to vector<8x64xf32>
    %54 = vector.extract_strided_slice %46 {offsets = [0, 192], sizes = [8, 64], strides = [1, 1]} : vector<8x256xf32> to vector<8x64xf32>
    %55 = arith.mulf %52, %40 : vector<8x64xf32>
    %56 = arith.mulf %51, %54 : vector<8x64xf32>
    %57 = arith.addf %55, %56 : vector<8x64xf32>
    %58 = math.tanh %57 : vector<8x64xf32>
    %59 = arith.mulf %53, %58 : vector<8x64xf32>
    %60 = vector.extract_strided_slice %5 {offsets = [24, 0], sizes = [8, 256], strides = [1, 1]} : vector<64x256xf32> to vector<8x256xf32>
    %cst_18 = arith.constant dense<0.000000e+00> : vector<8x256xf32>
    %61 = tpu.matmul %59, %6, %cst_18 {dimension_numbers = #tpu.dot_dimension_numbers<[1], [0], [0], [1], [0, 0, 1, 1], [], []>} : vector<8x64xf32>, vector<64x256xf32>, vector<8x256xf32> -> vector<8x256xf32>
    %62 = arith.addf %60, %61 : vector<8x256xf32>
    %63 = math.tanh %62 : vector<8x256xf32>
    %cst_19 = arith.constant 5.000000e-01 : f32
    %64 = vector.broadcast %cst_19 : f32 to vector<8x256xf32>
    %65 = arith.mulf %64, %63 : vector<8x256xf32>
    %cst_20 = arith.constant 5.000000e-01 : f32
    %66 = vector.broadcast %cst_20 : f32 to vector<8x256xf32>
    %67 = arith.addf %65, %66 : vector<8x256xf32>
    %68 = vector.extract_strided_slice %67 {offsets = [0, 0], sizes = [8, 64], strides = [1, 1]} : vector<8x256xf32> to vector<8x64xf32>
    %69 = vector.extract_strided_slice %67 {offsets = [0, 64], sizes = [8, 64], strides = [1, 1]} : vector<8x256xf32> to vector<8x64xf32>
    %70 = vector.extract_strided_slice %67 {offsets = [0, 128], sizes = [8, 64], strides = [1, 1]} : vector<8x256xf32> to vector<8x64xf32>
    %71 = vector.extract_strided_slice %63 {offsets = [0, 192], sizes = [8, 64], strides = [1, 1]} : vector<8x256xf32> to vector<8x64xf32>
    %72 = arith.mulf %69, %57 : vector<8x64xf32>
    %73 = arith.mulf %68, %71 : vector<8x64xf32>
    %74 = arith.addf %72, %73 : vector<8x64xf32>
    %75 = math.tanh %74 : vector<8x64xf32>
    %76 = arith.mulf %70, %75 : vector<8x64xf32>
    %77 = vector.extract_strided_slice %5 {offsets = [32, 0], sizes = [8, 256], strides = [1, 1]} : vector<64x256xf32> to vector<8x256xf32>
    %cst_21 = arith.constant dense<0.000000e+00> : vector<8x256xf32>
    %78 = tpu.matmul %76, %6, %cst_21 {dimension_numbers = #tpu.dot_dimension_numbers<[1], [0], [0], [1], [0, 0, 1, 1], [], []>} : vector<8x64xf32>, vector<64x256xf32>, vector<8x256xf32> -> vector<8x256xf32>
    %79 = arith.addf %77, %78 : vector<8x256xf32>
    %80 = math.tanh %79 : vector<8x256xf32>
    %cst_22 = arith.constant 5.000000e-01 : f32
    %81 = vector.broadcast %cst_22 : f32 to vector<8x256xf32>
    %82 = arith.mulf %81, %80 : vector<8x256xf32>
    %cst_23 = arith.constant 5.000000e-01 : f32
    %83 = vector.broadcast %cst_23 : f32 to vector<8x256xf32>
    %84 = arith.addf %82, %83 : vector<8x256xf32>
    %85 = vector.extract_strided_slice %84 {offsets = [0, 0], sizes = [8, 64], strides = [1, 1]} : vector<8x256xf32> to vector<8x64xf32>
    %86 = vector.extract_strided_slice %84 {offsets = [0, 64], sizes = [8, 64], strides = [1, 1]} : vector<8x256xf32> to vector<8x64xf32>
    %87 = vector.extract_strided_slice %84 {offsets = [0, 128], sizes = [8, 64], strides = [1, 1]} : vector<8x256xf32> to vector<8x64xf32>
    %88 = vector.extract_strided_slice %80 {offsets = [0, 192], sizes = [8, 64], strides = [1, 1]} : vector<8x256xf32> to vector<8x64xf32>
    %89 = arith.mulf %86, %74 : vector<8x64xf32>
    %90 = arith.mulf %85, %88 : vector<8x64xf32>
    %91 = arith.addf %89, %90 : vector<8x64xf32>
    %92 = math.tanh %91 : vector<8x64xf32>
    %93 = arith.mulf %87, %92 : vector<8x64xf32>
    %94 = vector.extract_strided_slice %5 {offsets = [40, 0], sizes = [8, 256], strides = [1, 1]} : vector<64x256xf32> to vector<8x256xf32>
    %cst_24 = arith.constant dense<0.000000e+00> : vector<8x256xf32>
    %95 = tpu.matmul %93, %6, %cst_24 {dimension_numbers = #tpu.dot_dimension_numbers<[1], [0], [0], [1], [0, 0, 1, 1], [], []>} : vector<8x64xf32>, vector<64x256xf32>, vector<8x256xf32> -> vector<8x256xf32>
    %96 = arith.addf %94, %95 : vector<8x256xf32>
    %97 = math.tanh %96 : vector<8x256xf32>
    %cst_25 = arith.constant 5.000000e-01 : f32
    %98 = vector.broadcast %cst_25 : f32 to vector<8x256xf32>
    %99 = arith.mulf %98, %97 : vector<8x256xf32>
    %cst_26 = arith.constant 5.000000e-01 : f32
    %100 = vector.broadcast %cst_26 : f32 to vector<8x256xf32>
    %101 = arith.addf %99, %100 : vector<8x256xf32>
    %102 = vector.extract_strided_slice %101 {offsets = [0, 0], sizes = [8, 64], strides = [1, 1]} : vector<8x256xf32> to vector<8x64xf32>
    %103 = vector.extract_strided_slice %101 {offsets = [0, 64], sizes = [8, 64], strides = [1, 1]} : vector<8x256xf32> to vector<8x64xf32>
    %104 = vector.extract_strided_slice %101 {offsets = [0, 128], sizes = [8, 64], strides = [1, 1]} : vector<8x256xf32> to vector<8x64xf32>
    %105 = vector.extract_strided_slice %97 {offsets = [0, 192], sizes = [8, 64], strides = [1, 1]} : vector<8x256xf32> to vector<8x64xf32>
    %106 = arith.mulf %103, %91 : vector<8x64xf32>
    %107 = arith.mulf %102, %105 : vector<8x64xf32>
    %108 = arith.addf %106, %107 : vector<8x64xf32>
    %109 = math.tanh %108 : vector<8x64xf32>
    %110 = arith.mulf %104, %109 : vector<8x64xf32>
    %111 = vector.extract_strided_slice %5 {offsets = [48, 0], sizes = [8, 256], strides = [1, 1]} : vector<64x256xf32> to vector<8x256xf32>
    %cst_27 = arith.constant dense<0.000000e+00> : vector<8x256xf32>
    %112 = tpu.matmul %110, %6, %cst_27 {dimension_numbers = #tpu.dot_dimension_numbers<[1], [0], [0], [1], [0, 0, 1, 1], [], []>} : vector<8x64xf32>, vector<64x256xf32>, vector<8x256xf32> -> vector<8x256xf32>
    %113 = arith.addf %111, %112 : vector<8x256xf32>
    %114 = math.tanh %113 : vector<8x256xf32>
    %cst_28 = arith.constant 5.000000e-01 : f32
    %115 = vector.broadcast %cst_28 : f32 to vector<8x256xf32>
    %116 = arith.mulf %115, %114 : vector<8x256xf32>
    %cst_29 = arith.constant 5.000000e-01 : f32
    %117 = vector.broadcast %cst_29 : f32 to vector<8x256xf32>
    %118 = arith.addf %116, %117 : vector<8x256xf32>
    %119 = vector.extract_strided_slice %118 {offsets = [0, 0], sizes = [8, 64], strides = [1, 1]} : vector<8x256xf32> to vector<8x64xf32>
    %120 = vector.extract_strided_slice %118 {offsets = [0, 64], sizes = [8, 64], strides = [1, 1]} : vector<8x256xf32> to vector<8x64xf32>
    %121 = vector.extract_strided_slice %118 {offsets = [0, 128], sizes = [8, 64], strides = [1, 1]} : vector<8x256xf32> to vector<8x64xf32>
    %122 = vector.extract_strided_slice %114 {offsets = [0, 192], sizes = [8, 64], strides = [1, 1]} : vector<8x256xf32> to vector<8x64xf32>
    %123 = arith.mulf %120, %108 : vector<8x64xf32>
    %124 = arith.mulf %119, %122 : vector<8x64xf32>
    %125 = arith.addf %123, %124 : vector<8x64xf32>
    %126 = math.tanh %125 : vector<8x64xf32>
    %127 = arith.mulf %121, %126 : vector<8x64xf32>
    %128 = vector.extract_strided_slice %5 {offsets = [56, 0], sizes = [8, 256], strides = [1, 1]} : vector<64x256xf32> to vector<8x256xf32>
    %cst_30 = arith.constant dense<0.000000e+00> : vector<8x256xf32>
    %129 = tpu.matmul %127, %6, %cst_30 {dimension_numbers = #tpu.dot_dimension_numbers<[1], [0], [0], [1], [0, 0, 1, 1], [], []>} : vector<8x64xf32>, vector<64x256xf32>, vector<8x256xf32> -> vector<8x256xf32>
    %130 = arith.addf %128, %129 : vector<8x256xf32>
    %131 = math.tanh %130 : vector<8x256xf32>
    %cst_31 = arith.constant 5.000000e-01 : f32
    %132 = vector.broadcast %cst_31 : f32 to vector<8x256xf32>
    %133 = arith.mulf %132, %131 : vector<8x256xf32>
    %cst_32 = arith.constant 5.000000e-01 : f32
    %134 = vector.broadcast %cst_32 : f32 to vector<8x256xf32>
    %135 = arith.addf %133, %134 : vector<8x256xf32>
    %136 = vector.extract_strided_slice %135 {offsets = [0, 0], sizes = [8, 64], strides = [1, 1]} : vector<8x256xf32> to vector<8x64xf32>
    %137 = vector.extract_strided_slice %135 {offsets = [0, 64], sizes = [8, 64], strides = [1, 1]} : vector<8x256xf32> to vector<8x64xf32>
    %138 = vector.extract_strided_slice %135 {offsets = [0, 128], sizes = [8, 64], strides = [1, 1]} : vector<8x256xf32> to vector<8x64xf32>
    %139 = vector.extract_strided_slice %131 {offsets = [0, 192], sizes = [8, 64], strides = [1, 1]} : vector<8x256xf32> to vector<8x64xf32>
    %140 = arith.mulf %137, %125 : vector<8x64xf32>
    %141 = arith.mulf %136, %139 : vector<8x64xf32>
    %142 = arith.addf %140, %141 : vector<8x64xf32>
    %143 = math.tanh %142 : vector<8x64xf32>
    %144 = arith.mulf %138, %143 : vector<8x64xf32>
    %145 = tpu.concatenate %25, %42, %59, %76, %93, %110, %127, %144 in 0 : vector<8x64xf32>, vector<8x64xf32>, vector<8x64xf32>, vector<8x64xf32>, vector<8x64xf32>, vector<8x64xf32>, vector<8x64xf32>, vector<8x64xf32> -> vector<64x64xf32>
    %146 = tpu.concatenate %144, %127, %110, %93, %76, %59, %42, %25 in 0 : vector<8x64xf32>, vector<8x64xf32>, vector<8x64xf32>, vector<8x64xf32>, vector<8x64xf32>, vector<8x64xf32>, vector<8x64xf32>, vector<8x64xf32> -> vector<64x64xf32>
    %c0_33 = arith.constant 0 : index
    %c0_34 = arith.constant 0 : index
    %147 = vector.load %arg4[%c0_33, %c0_34] : memref<64x256xf32, #tpu.memory_space<vmem>>, vector<64x256xf32>
    %cst_35 = arith.constant dense<0.000000e+00> : vector<64x256xf32>
    %148 = tpu.matmul %145, %147, %cst_35 {dimension_numbers = #tpu.dot_dimension_numbers<[1], [0], [0], [1], [0, 0, 1, 1], [], []>} : vector<64x64xf32>, vector<64x256xf32>, vector<64x256xf32> -> vector<64x256xf32>
    %c0_36 = arith.constant 0 : index
    %c0_37 = arith.constant 0 : index
    %149 = vector.load %arg5[%c0_36, %c0_37] : memref<64x256xf32, #tpu.memory_space<vmem>>, vector<64x256xf32>
    %cst_38 = arith.constant dense<0.000000e+00> : vector<64x256xf32>
    %150 = tpu.matmul %146, %149, %cst_38 {dimension_numbers = #tpu.dot_dimension_numbers<[1], [0], [0], [1], [0, 0, 1, 1], [], []>} : vector<64x64xf32>, vector<64x256xf32>, vector<64x256xf32> -> vector<64x256xf32>
    %151 = arith.addf %148, %150 : vector<64x256xf32>
    %c0_39 = arith.constant 0 : index
    %c0_40 = arith.constant 0 : index
    %152 = vector.load %arg6[%c0_39, %c0_40] : memref<1x256xf32, #tpu.memory_space<vmem>>, vector<1x256xf32>
    %153 = vector.broadcast %152 : vector<1x256xf32> to vector<64x256xf32>
    %154 = arith.addf %151, %153 : vector<64x256xf32>
    %c0_41 = arith.constant 0 : index
    %c0_42 = arith.constant 0 : index
    %155 = vector.load %arg7[%c0_41, %c0_42] : memref<64x256xf32, #tpu.memory_space<vmem>>, vector<64x256xf32>
    %cst_43 = arith.constant 0.000000e+00 : f32
    %156 = vector.broadcast %cst_43 : f32 to vector<8x64xf32>
    %cst_44 = arith.constant 0.000000e+00 : f32
    %157 = vector.broadcast %cst_44 : f32 to vector<8x64xf32>
    %158 = vector.extract_strided_slice %154 {offsets = [0, 0], sizes = [8, 256], strides = [1, 1]} : vector<64x256xf32> to vector<8x256xf32>
    %cst_45 = arith.constant dense<0.000000e+00> : vector<8x256xf32>
    %159 = tpu.matmul %156, %155, %cst_45 {dimension_numbers = #tpu.dot_dimension_numbers<[1], [0], [0], [1], [0, 0, 1, 1], [], []>} : vector<8x64xf32>, vector<64x256xf32>, vector<8x256xf32> -> vector<8x256xf32>
    %160 = arith.addf %158, %159 : vector<8x256xf32>
    %161 = math.tanh %160 : vector<8x256xf32>
    %cst_46 = arith.constant 5.000000e-01 : f32
    %162 = vector.broadcast %cst_46 : f32 to vector<8x256xf32>
    %163 = arith.mulf %162, %161 : vector<8x256xf32>
    %cst_47 = arith.constant 5.000000e-01 : f32
    %164 = vector.broadcast %cst_47 : f32 to vector<8x256xf32>
    %165 = arith.addf %163, %164 : vector<8x256xf32>
    %166 = vector.extract_strided_slice %165 {offsets = [0, 0], sizes = [8, 64], strides = [1, 1]} : vector<8x256xf32> to vector<8x64xf32>
    %167 = vector.extract_strided_slice %165 {offsets = [0, 64], sizes = [8, 64], strides = [1, 1]} : vector<8x256xf32> to vector<8x64xf32>
    %168 = vector.extract_strided_slice %165 {offsets = [0, 128], sizes = [8, 64], strides = [1, 1]} : vector<8x256xf32> to vector<8x64xf32>
    %169 = vector.extract_strided_slice %161 {offsets = [0, 192], sizes = [8, 64], strides = [1, 1]} : vector<8x256xf32> to vector<8x64xf32>
    %170 = arith.mulf %167, %157 : vector<8x64xf32>
    %171 = arith.mulf %166, %169 : vector<8x64xf32>
    %172 = arith.addf %170, %171 : vector<8x64xf32>
    %173 = math.tanh %172 : vector<8x64xf32>
    %174 = arith.mulf %168, %173 : vector<8x64xf32>
    %175 = vector.extract_strided_slice %154 {offsets = [8, 0], sizes = [8, 256], strides = [1, 1]} : vector<64x256xf32> to vector<8x256xf32>
    %cst_48 = arith.constant dense<0.000000e+00> : vector<8x256xf32>
    %176 = tpu.matmul %174, %155, %cst_48 {dimension_numbers = #tpu.dot_dimension_numbers<[1], [0], [0], [1], [0, 0, 1, 1], [], []>} : vector<8x64xf32>, vector<64x256xf32>, vector<8x256xf32> -> vector<8x256xf32>
    %177 = arith.addf %175, %176 : vector<8x256xf32>
    %178 = math.tanh %177 : vector<8x256xf32>
    %cst_49 = arith.constant 5.000000e-01 : f32
    %179 = vector.broadcast %cst_49 : f32 to vector<8x256xf32>
    %180 = arith.mulf %179, %178 : vector<8x256xf32>
    %cst_50 = arith.constant 5.000000e-01 : f32
    %181 = vector.broadcast %cst_50 : f32 to vector<8x256xf32>
    %182 = arith.addf %180, %181 : vector<8x256xf32>
    %183 = vector.extract_strided_slice %182 {offsets = [0, 0], sizes = [8, 64], strides = [1, 1]} : vector<8x256xf32> to vector<8x64xf32>
    %184 = vector.extract_strided_slice %182 {offsets = [0, 64], sizes = [8, 64], strides = [1, 1]} : vector<8x256xf32> to vector<8x64xf32>
    %185 = vector.extract_strided_slice %182 {offsets = [0, 128], sizes = [8, 64], strides = [1, 1]} : vector<8x256xf32> to vector<8x64xf32>
    %186 = vector.extract_strided_slice %178 {offsets = [0, 192], sizes = [8, 64], strides = [1, 1]} : vector<8x256xf32> to vector<8x64xf32>
    %187 = arith.mulf %184, %172 : vector<8x64xf32>
    %188 = arith.mulf %183, %186 : vector<8x64xf32>
    %189 = arith.addf %187, %188 : vector<8x64xf32>
    %190 = math.tanh %189 : vector<8x64xf32>
    %191 = arith.mulf %185, %190 : vector<8x64xf32>
    %192 = vector.extract_strided_slice %154 {offsets = [16, 0], sizes = [8, 256], strides = [1, 1]} : vector<64x256xf32> to vector<8x256xf32>
    %cst_51 = arith.constant dense<0.000000e+00> : vector<8x256xf32>
    %193 = tpu.matmul %191, %155, %cst_51 {dimension_numbers = #tpu.dot_dimension_numbers<[1], [0], [0], [1], [0, 0, 1, 1], [], []>} : vector<8x64xf32>, vector<64x256xf32>, vector<8x256xf32> -> vector<8x256xf32>
    %194 = arith.addf %192, %193 : vector<8x256xf32>
    %195 = math.tanh %194 : vector<8x256xf32>
    %cst_52 = arith.constant 5.000000e-01 : f32
    %196 = vector.broadcast %cst_52 : f32 to vector<8x256xf32>
    %197 = arith.mulf %196, %195 : vector<8x256xf32>
    %cst_53 = arith.constant 5.000000e-01 : f32
    %198 = vector.broadcast %cst_53 : f32 to vector<8x256xf32>
    %199 = arith.addf %197, %198 : vector<8x256xf32>
    %200 = vector.extract_strided_slice %199 {offsets = [0, 0], sizes = [8, 64], strides = [1, 1]} : vector<8x256xf32> to vector<8x64xf32>
    %201 = vector.extract_strided_slice %199 {offsets = [0, 64], sizes = [8, 64], strides = [1, 1]} : vector<8x256xf32> to vector<8x64xf32>
    %202 = vector.extract_strided_slice %199 {offsets = [0, 128], sizes = [8, 64], strides = [1, 1]} : vector<8x256xf32> to vector<8x64xf32>
    %203 = vector.extract_strided_slice %195 {offsets = [0, 192], sizes = [8, 64], strides = [1, 1]} : vector<8x256xf32> to vector<8x64xf32>
    %204 = arith.mulf %201, %189 : vector<8x64xf32>
    %205 = arith.mulf %200, %203 : vector<8x64xf32>
    %206 = arith.addf %204, %205 : vector<8x64xf32>
    %207 = math.tanh %206 : vector<8x64xf32>
    %208 = arith.mulf %202, %207 : vector<8x64xf32>
    %209 = vector.extract_strided_slice %154 {offsets = [24, 0], sizes = [8, 256], strides = [1, 1]} : vector<64x256xf32> to vector<8x256xf32>
    %cst_54 = arith.constant dense<0.000000e+00> : vector<8x256xf32>
    %210 = tpu.matmul %208, %155, %cst_54 {dimension_numbers = #tpu.dot_dimension_numbers<[1], [0], [0], [1], [0, 0, 1, 1], [], []>} : vector<8x64xf32>, vector<64x256xf32>, vector<8x256xf32> -> vector<8x256xf32>
    %211 = arith.addf %209, %210 : vector<8x256xf32>
    %212 = math.tanh %211 : vector<8x256xf32>
    %cst_55 = arith.constant 5.000000e-01 : f32
    %213 = vector.broadcast %cst_55 : f32 to vector<8x256xf32>
    %214 = arith.mulf %213, %212 : vector<8x256xf32>
    %cst_56 = arith.constant 5.000000e-01 : f32
    %215 = vector.broadcast %cst_56 : f32 to vector<8x256xf32>
    %216 = arith.addf %214, %215 : vector<8x256xf32>
    %217 = vector.extract_strided_slice %216 {offsets = [0, 0], sizes = [8, 64], strides = [1, 1]} : vector<8x256xf32> to vector<8x64xf32>
    %218 = vector.extract_strided_slice %216 {offsets = [0, 64], sizes = [8, 64], strides = [1, 1]} : vector<8x256xf32> to vector<8x64xf32>
    %219 = vector.extract_strided_slice %216 {offsets = [0, 128], sizes = [8, 64], strides = [1, 1]} : vector<8x256xf32> to vector<8x64xf32>
    %220 = vector.extract_strided_slice %212 {offsets = [0, 192], sizes = [8, 64], strides = [1, 1]} : vector<8x256xf32> to vector<8x64xf32>
    %221 = arith.mulf %218, %206 : vector<8x64xf32>
    %222 = arith.mulf %217, %220 : vector<8x64xf32>
    %223 = arith.addf %221, %222 : vector<8x64xf32>
    %224 = math.tanh %223 : vector<8x64xf32>
    %225 = arith.mulf %219, %224 : vector<8x64xf32>
    %226 = vector.extract_strided_slice %154 {offsets = [32, 0], sizes = [8, 256], strides = [1, 1]} : vector<64x256xf32> to vector<8x256xf32>
    %cst_57 = arith.constant dense<0.000000e+00> : vector<8x256xf32>
    %227 = tpu.matmul %225, %155, %cst_57 {dimension_numbers = #tpu.dot_dimension_numbers<[1], [0], [0], [1], [0, 0, 1, 1], [], []>} : vector<8x64xf32>, vector<64x256xf32>, vector<8x256xf32> -> vector<8x256xf32>
    %228 = arith.addf %226, %227 : vector<8x256xf32>
    %229 = math.tanh %228 : vector<8x256xf32>
    %cst_58 = arith.constant 5.000000e-01 : f32
    %230 = vector.broadcast %cst_58 : f32 to vector<8x256xf32>
    %231 = arith.mulf %230, %229 : vector<8x256xf32>
    %cst_59 = arith.constant 5.000000e-01 : f32
    %232 = vector.broadcast %cst_59 : f32 to vector<8x256xf32>
    %233 = arith.addf %231, %232 : vector<8x256xf32>
    %234 = vector.extract_strided_slice %233 {offsets = [0, 0], sizes = [8, 64], strides = [1, 1]} : vector<8x256xf32> to vector<8x64xf32>
    %235 = vector.extract_strided_slice %233 {offsets = [0, 64], sizes = [8, 64], strides = [1, 1]} : vector<8x256xf32> to vector<8x64xf32>
    %236 = vector.extract_strided_slice %233 {offsets = [0, 128], sizes = [8, 64], strides = [1, 1]} : vector<8x256xf32> to vector<8x64xf32>
    %237 = vector.extract_strided_slice %229 {offsets = [0, 192], sizes = [8, 64], strides = [1, 1]} : vector<8x256xf32> to vector<8x64xf32>
    %238 = arith.mulf %235, %223 : vector<8x64xf32>
    %239 = arith.mulf %234, %237 : vector<8x64xf32>
    %240 = arith.addf %238, %239 : vector<8x64xf32>
    %241 = math.tanh %240 : vector<8x64xf32>
    %242 = arith.mulf %236, %241 : vector<8x64xf32>
    %243 = vector.extract_strided_slice %154 {offsets = [40, 0], sizes = [8, 256], strides = [1, 1]} : vector<64x256xf32> to vector<8x256xf32>
    %cst_60 = arith.constant dense<0.000000e+00> : vector<8x256xf32>
    %244 = tpu.matmul %242, %155, %cst_60 {dimension_numbers = #tpu.dot_dimension_numbers<[1], [0], [0], [1], [0, 0, 1, 1], [], []>} : vector<8x64xf32>, vector<64x256xf32>, vector<8x256xf32> -> vector<8x256xf32>
    %245 = arith.addf %243, %244 : vector<8x256xf32>
    %246 = math.tanh %245 : vector<8x256xf32>
    %cst_61 = arith.constant 5.000000e-01 : f32
    %247 = vector.broadcast %cst_61 : f32 to vector<8x256xf32>
    %248 = arith.mulf %247, %246 : vector<8x256xf32>
    %cst_62 = arith.constant 5.000000e-01 : f32
    %249 = vector.broadcast %cst_62 : f32 to vector<8x256xf32>
    %250 = arith.addf %248, %249 : vector<8x256xf32>
    %251 = vector.extract_strided_slice %250 {offsets = [0, 0], sizes = [8, 64], strides = [1, 1]} : vector<8x256xf32> to vector<8x64xf32>
    %252 = vector.extract_strided_slice %250 {offsets = [0, 64], sizes = [8, 64], strides = [1, 1]} : vector<8x256xf32> to vector<8x64xf32>
    %253 = vector.extract_strided_slice %250 {offsets = [0, 128], sizes = [8, 64], strides = [1, 1]} : vector<8x256xf32> to vector<8x64xf32>
    %254 = vector.extract_strided_slice %246 {offsets = [0, 192], sizes = [8, 64], strides = [1, 1]} : vector<8x256xf32> to vector<8x64xf32>
    %255 = arith.mulf %252, %240 : vector<8x64xf32>
    %256 = arith.mulf %251, %254 : vector<8x64xf32>
    %257 = arith.addf %255, %256 : vector<8x64xf32>
    %258 = math.tanh %257 : vector<8x64xf32>
    %259 = arith.mulf %253, %258 : vector<8x64xf32>
    %260 = vector.extract_strided_slice %154 {offsets = [48, 0], sizes = [8, 256], strides = [1, 1]} : vector<64x256xf32> to vector<8x256xf32>
    %cst_63 = arith.constant dense<0.000000e+00> : vector<8x256xf32>
    %261 = tpu.matmul %259, %155, %cst_63 {dimension_numbers = #tpu.dot_dimension_numbers<[1], [0], [0], [1], [0, 0, 1, 1], [], []>} : vector<8x64xf32>, vector<64x256xf32>, vector<8x256xf32> -> vector<8x256xf32>
    %262 = arith.addf %260, %261 : vector<8x256xf32>
    %263 = math.tanh %262 : vector<8x256xf32>
    %cst_64 = arith.constant 5.000000e-01 : f32
    %264 = vector.broadcast %cst_64 : f32 to vector<8x256xf32>
    %265 = arith.mulf %264, %263 : vector<8x256xf32>
    %cst_65 = arith.constant 5.000000e-01 : f32
    %266 = vector.broadcast %cst_65 : f32 to vector<8x256xf32>
    %267 = arith.addf %265, %266 : vector<8x256xf32>
    %268 = vector.extract_strided_slice %267 {offsets = [0, 0], sizes = [8, 64], strides = [1, 1]} : vector<8x256xf32> to vector<8x64xf32>
    %269 = vector.extract_strided_slice %267 {offsets = [0, 64], sizes = [8, 64], strides = [1, 1]} : vector<8x256xf32> to vector<8x64xf32>
    %270 = vector.extract_strided_slice %267 {offsets = [0, 128], sizes = [8, 64], strides = [1, 1]} : vector<8x256xf32> to vector<8x64xf32>
    %271 = vector.extract_strided_slice %263 {offsets = [0, 192], sizes = [8, 64], strides = [1, 1]} : vector<8x256xf32> to vector<8x64xf32>
    %272 = arith.mulf %269, %257 : vector<8x64xf32>
    %273 = arith.mulf %268, %271 : vector<8x64xf32>
    %274 = arith.addf %272, %273 : vector<8x64xf32>
    %275 = math.tanh %274 : vector<8x64xf32>
    %276 = arith.mulf %270, %275 : vector<8x64xf32>
    %277 = vector.extract_strided_slice %154 {offsets = [56, 0], sizes = [8, 256], strides = [1, 1]} : vector<64x256xf32> to vector<8x256xf32>
    %cst_66 = arith.constant dense<0.000000e+00> : vector<8x256xf32>
    %278 = tpu.matmul %276, %155, %cst_66 {dimension_numbers = #tpu.dot_dimension_numbers<[1], [0], [0], [1], [0, 0, 1, 1], [], []>} : vector<8x64xf32>, vector<64x256xf32>, vector<8x256xf32> -> vector<8x256xf32>
    %279 = arith.addf %277, %278 : vector<8x256xf32>
    %280 = math.tanh %279 : vector<8x256xf32>
    %cst_67 = arith.constant 5.000000e-01 : f32
    %281 = vector.broadcast %cst_67 : f32 to vector<8x256xf32>
    %282 = arith.mulf %281, %280 : vector<8x256xf32>
    %cst_68 = arith.constant 5.000000e-01 : f32
    %283 = vector.broadcast %cst_68 : f32 to vector<8x256xf32>
    %284 = arith.addf %282, %283 : vector<8x256xf32>
    %285 = vector.extract_strided_slice %284 {offsets = [0, 0], sizes = [8, 64], strides = [1, 1]} : vector<8x256xf32> to vector<8x64xf32>
    %286 = vector.extract_strided_slice %284 {offsets = [0, 64], sizes = [8, 64], strides = [1, 1]} : vector<8x256xf32> to vector<8x64xf32>
    %287 = vector.extract_strided_slice %284 {offsets = [0, 128], sizes = [8, 64], strides = [1, 1]} : vector<8x256xf32> to vector<8x64xf32>
    %288 = vector.extract_strided_slice %280 {offsets = [0, 192], sizes = [8, 64], strides = [1, 1]} : vector<8x256xf32> to vector<8x64xf32>
    %289 = arith.mulf %286, %274 : vector<8x64xf32>
    %290 = arith.mulf %285, %288 : vector<8x64xf32>
    %291 = arith.addf %289, %290 : vector<8x64xf32>
    %292 = math.tanh %291 : vector<8x64xf32>
    %293 = arith.mulf %287, %292 : vector<8x64xf32>
    %294 = tpu.concatenate %174, %191, %208, %225, %242, %259, %276, %293 in 0 : vector<8x64xf32>, vector<8x64xf32>, vector<8x64xf32>, vector<8x64xf32>, vector<8x64xf32>, vector<8x64xf32>, vector<8x64xf32>, vector<8x64xf32> -> vector<64x64xf32>
    %295 = tpu.concatenate %293, %276, %259, %242, %225, %208, %191, %174 in 0 : vector<8x64xf32>, vector<8x64xf32>, vector<8x64xf32>, vector<8x64xf32>, vector<8x64xf32>, vector<8x64xf32>, vector<8x64xf32>, vector<8x64xf32> -> vector<64x64xf32>
    %c0_69 = arith.constant 0 : index
    %c0_70 = arith.constant 0 : index
    %296 = vector.load %arg8[%c0_69, %c0_70] : memref<64x128xf32, #tpu.memory_space<vmem>>, vector<64x128xf32>
    %cst_71 = arith.constant dense<0.000000e+00> : vector<64x128xf32>
    %297 = tpu.matmul %294, %296, %cst_71 {dimension_numbers = #tpu.dot_dimension_numbers<[1], [0], [0], [1], [0, 0, 1, 1], [], []>} : vector<64x64xf32>, vector<64x128xf32>, vector<64x128xf32> -> vector<64x128xf32>
    %c0_72 = arith.constant 0 : index
    %c0_73 = arith.constant 0 : index
    %298 = vector.load %arg9[%c0_72, %c0_73] : memref<64x128xf32, #tpu.memory_space<vmem>>, vector<64x128xf32>
    %cst_74 = arith.constant dense<0.000000e+00> : vector<64x128xf32>
    %299 = tpu.matmul %295, %298, %cst_74 {dimension_numbers = #tpu.dot_dimension_numbers<[1], [0], [0], [1], [0, 0, 1, 1], [], []>} : vector<64x64xf32>, vector<64x128xf32>, vector<64x128xf32> -> vector<64x128xf32>
    %300 = arith.addf %297, %299 : vector<64x128xf32>
    %c0_75 = arith.constant 0 : index
    %c0_76 = arith.constant 0 : index
    %301 = vector.load %arg10[%c0_75, %c0_76] : memref<1x128xf32, #tpu.memory_space<vmem>>, vector<1x128xf32>
    %302 = vector.broadcast %301 : vector<1x128xf32> to vector<64x128xf32>
    %303 = arith.addf %300, %302 : vector<64x128xf32>
    %c0_77 = arith.constant 0 : index
    %c0_78 = arith.constant 0 : index
    %304 = vector.load %arg11[%c0_77, %c0_78] : memref<64x128xf32, #tpu.memory_space<vmem>>, vector<64x128xf32>
    tpu.vector_store %arg11[%c0_77, %c0_78], %303 {strides = array<i32>} : memref<64x128xf32, #tpu.memory_space<vmem>>, vector<64x128xf32>,
    return
  }
}

</mosaic_0001>

<llo_original>
// kernel: rnnocr_forward.1
$region0: #{rnnocr_forward.1}
  #allocation0 [shape = 'u32[]', space=smem, size = 0x4, offset = 0x4, fixed_abs, tag = 'smem constant byte address 0x4 - core index']
  #allocation1 [shape = 'u32[144,128]{1,0:T(1,128)}', space=vmem, size = 0x12000, scoped, tag = 'internal scratch']
  %s0 = inlined_call_operand.vmem [shape: f32[64,32], index: 0, kind: input, shape index: {}]
  %s1 = inlined_call_operand.hbm [shape: f32[32,256], index: 1, kind: input, shape index: {}]
  %s2 = inlined_call_operand.vmem [shape: f32[1,256], index: 2, kind: input, shape index: {}]
  %s3 = inlined_call_operand.vmem [shape: f32[64,256], index: 3, kind: input, shape index: {}]
  %s4 = inlined_call_operand.vmem [shape: f32[64,256], index: 4, kind: input, shape index: {}]
  %s5 = inlined_call_operand.vmem [shape: f32[64,256], index: 5, kind: input, shape index: {}]
  %s6 = inlined_call_operand.vmem [shape: f32[1,256], index: 6, kind: input, shape index: {}]
  %s7 = inlined_call_operand.vmem [shape: f32[64,256], index: 7, kind: input, shape index: {}]
  %s8 = inlined_call_operand.hbm [shape: f32[64,128], index: 8, kind: input, shape index: {}]
  %s9 = inlined_call_operand.hbm [shape: f32[64,128], index: 9, kind: input, shape index: {}]
  %s10 = inlined_call_operand.vmem [shape: f32[1,128], index: 10, kind: input, shape index: {}]
  %s11 = inlined_call_operand.vmem [shape: f32[64,128], index: 11, kind: output, shape index: {}]
  %s12 = sld [smem:[#allocation0]]
  $region66: #{rnnocr_forward.1} parent=0
    _
  %s14 = ssub.s32 1, %s12
  %s15 = scalar_select 0, %s14, %s12
  $region1: #{rnnocr_forward.1} parent=0
    #allocation2 [shape = 'u8[32768]{0}', space=vmem, size = 0x8000, scoped, tag = 'input window, operand 1, single buffered']
    #allocation3 [shape = 's32[1]{0}', space=sflag, size = 0x4, scoped, tag = 'scoped memory for rnnocr_forward.1']
    #allocation4 [shape = 'u8[32768]{0}', space=vmem, size = 0x8000, scoped, tag = 'input window, operand 8, single buffered']
    #allocation5 [shape = 's32[1]{0}', space=sflag, size = 0x4, scoped, tag = 'scoped memory for rnnocr_forward.1']
    #allocation6 [shape = 'u8[32768]{0}', space=vmem, size = 0x8000, scoped, tag = 'input window, operand 9, single buffered']
    %16 = vsyncpa [#allocation3], 0
    %17 = vsyncpa [#allocation5], 0
    // Predicated region
    $region2: #{rnnocr_forward.1} parent=1 // pred_check
      _
    $region3: #{rnnocr_forward.1} parent=1 // pred_check_branch
      %19 = sbr.rel (0) target = $region5
    $region4: #{rnnocr_forward.1} parent=1 // pred_region
      _
    $region5: #{rnnocr_forward.1} parent=1 // pred_fallthru
      _
    // Predicated region
    $region6: #{rnnocr_forward.1} parent=1 // pred_check
      _
    $region7: #{rnnocr_forward.1} parent=1 // pred_check_branch
      %21 = sbr.rel (0) target = $region9
    $region8: #{rnnocr_forward.1} parent=1 // pred_region
      %s23 = ssub.s32 1024, 1024
      %24 = vsyncadd [#allocation3], %s23
      %s25 = sshll.u32 [#allocation2], 4
      %s26 = int_to_ptr.vmem [resolvable:$true] %s25
      %31 = dma.hbm_to_vmem [thread:$0]  %s1, 1024, %s26, [#allocation3], 256, 256, 16
    $region9: #{rnnocr_forward.1} parent=1 // pred_fallthru
      _
    // Predicated region
    $region10: #{rnnocr_forward.1} parent=1 // pred_check
      _
    $region11: #{rnnocr_forward.1} parent=1 // pred_check_branch
      %33 = sbr.rel (0) target = $region13
    $region12: #{rnnocr_forward.1} parent=1 // pred_region
      _
    $region13: #{rnnocr_forward.1} parent=1 // pred_fallthru
      _
    // Predicated region
    $region14: #{rnnocr_forward.1} parent=1 // pred_check
      _
    $region15: #{rnnocr_forward.1} parent=1 // pred_check_branch
      %35 = sbr.rel (0) target = $region17
    $region16: #{rnnocr_forward.1} parent=1 // pred_region
      _
    $region17: #{rnnocr_forward.1} parent=1 // pred_fallthru
      _
    // Predicated region
    $region18: #{rnnocr_forward.1} parent=1 // pred_check
      _
    $region19: #{rnnocr_forward.1} parent=1 // pred_check_branch
      %37 = sbr.rel (0) target = $region21
    $region20: #{rnnocr_forward.1} parent=1 // pred_region
      _
    $region21: #{rnnocr_forward.1} parent=1 // pred_fallthru
      _
    // Predicated region
    $region22: #{rnnocr_forward.1} parent=1 // pred_check
      _
    $region23: #{rnnocr_forward.1} parent=1 // pred_check_branch
      %39 = sbr.rel (0) target = $region25
    $region24: #{rnnocr_forward.1} parent=1 // pred_region
      _
    $region25: #{rnnocr_forward.1} parent=1 // pred_fallthru
      _
    // Predicated region
    $region26: #{rnnocr_forward.1} parent=1 // pred_check
      _
    $region27: #{rnnocr_forward.1} parent=1 // pred_check_branch
      %41 = sbr.rel (0) target = $region29
    $region28: #{rnnocr_forward.1} parent=1 // pred_region
      _
    $region29: #{rnnocr_forward.1} parent=1 // pred_fallthru
      _
    // Predicated region
    $region30: #{rnnocr_forward.1} parent=1 // pred_check
      _
    $region31: #{rnnocr_forward.1} parent=1 // pred_check_branch
      %43 = sbr.rel (0) target = $region33
    $region32: #{rnnocr_forward.1} parent=1 // pred_region
      _
    $region33: #{rnnocr_forward.1} parent=1 // pred_fallthru
      _
    // Predicated region
    $region34: #{rnnocr_forward.1} parent=1 // pred_check
      _
    $region35: #{rnnocr_forward.1} parent=1 // pred_check_branch
      %45 = sbr.rel (0) target = $region37
    $region36: #{rnnocr_forward.1} parent=1 // pred_region
      %s47 = ssub.s32 1024, 1024
      %48 = vsyncadd [#allocation5], %s47
      %s49 = sshll.u32 [#allocation4], 4
      %s50 = int_to_ptr.vmem [resolvable:$true] %s49
      %55 = dma.hbm_to_vmem [thread:$0]  %s8, 1024, %s50, [#allocation5], 128, 128, 8
    $region37: #{rnnocr_forward.1} parent=1 // pred_fallthru
      _
    // Predicated region
    $region38: #{rnnocr_forward.1} parent=1 // pred_check
      _
    $region39: #{rnnocr_forward.1} parent=1 // pred_check_branch
      %57 = sbr.rel (0) target = $region41
    $region40: #{rnnocr_forward.1} parent=1 // pred_region
      %s59 = ssub.s32 1024, 1024
      %60 = vsyncadd [#allocation5], %s59
      %s61 = sshll.u32 [#allocation6], 4
      %s62 = int_to_ptr.vmem [resolvable:$true] %s61
      %67 = dma.hbm_to_vmem [thread:$0]  %s9, 1024, %s62, [#allocation5], 128, 128, 8
    $region41: #{rnnocr_forward.1} parent=1 // pred_fallthru
      _
    // Predicated region
    $region42: #{rnnocr_forward.1} parent=1 // pred_check
      _
    $region43: #{rnnocr_forward.1} parent=1 // pred_check_branch
      %69 = sbr.rel (0) target = $region45
    $region44: #{rnnocr_forward.1} parent=1 // pred_region
      _
    $region45: #{rnnocr_forward.1} parent=1 // pred_fallthru
      _
    // Predicated region
    $region46: #{rnnocr_forward.1} parent=1 // pred_check
      _
    $region47: #{rnnocr_forward.1} parent=1 // pred_check_branch
      %71 = sbr.rel (0) target = $region49
    $region48: #{rnnocr_forward.1} parent=1 // pred_region
      %72 = dma.done [#allocation3], 1024
    $region49: #{rnnocr_forward.1} parent=1 // pred_fallthru
      _
    // Predicated region
    $region50: #{rnnocr_forward.1} parent=1 // pred_check
      _
    $region51: #{rnnocr_forward.1} parent=1 // pred_check_branch
      %74 = sbr.rel (0) target = $region53
    $region52: #{rnnocr_forward.1} parent=1 // pred_region
      %75 = dma.done [#allocation5], 1024
    $region53: #{rnnocr_forward.1} parent=1 // pred_fallthru
      _
    // Predicated region
    $region54: #{rnnocr_forward.1} parent=1 // pred_check
      _
    $region55: #{rnnocr_forward.1} parent=1 // pred_check_branch
      %77 = sbr.rel (0) target = $region57
    $region56: #{rnnocr_forward.1} parent=1 // pred_region
      %78 = dma.done [#allocation5], 1024
    $region57: #{rnnocr_forward.1} parent=1 // pred_fallthru
      _
    %v79 = vld [vmem:[%s0] sm:$0xff]
    %v80 = vld [vmem:[%s0 + $0x8] sm:$0xff]
    %v81 = vld [vmem:[%s0 + $0x10] sm:$0xff]
    %v82 = vld [vmem:[%s0 + $0x18] sm:$0xff]
    %v83 = vld [vmem:[%s0 + $0x20] sm:$0xff]
    %v84 = vld [vmem:[%s0 + $0x28] sm:$0xff]
    %v85 = vld [vmem:[%s0 + $0x30] sm:$0xff]
    %v86 = vld [vmem:[%s0 + $0x38] sm:$0xff]
    %v87 = vld [vmem:[#allocation2] sm:$0xff]
    %v88 = vld [vmem:[#allocation2 + $0x8] sm:$0xff]
    %v89 = vld [vmem:[#allocation2 + $0x10] sm:$0xff]
    %v90 = vld [vmem:[#allocation2 + $0x18] sm:$0xff]
    %v91 = vld [vmem:[#allocation2 + $0x20] sm:$0xff]
    %v92 = vld [vmem:[#allocation2 + $0x28] sm:$0xff]
    %v93 = vld [vmem:[#allocation2 + $0x30] sm:$0xff]
    %v94 = vld [vmem:[#allocation2 + $0x38] sm:$0xff]
    %v95 = vld [vmem:[%s2] sm:$0x3]
    %v97 = vlaneseq
    %v98 = vshrl.u32 %v97, 7
    %v99 = vsub.s32 0, %v98
    %v100 = vrot.slane %v95, %v99
    %v101 = vlaneseq
    %v102 = vshrl.u32 %v101, 7
    %v103 = vsub.s32 1, %v102
    %v104 = vrot.slane %v95, %v103
    %vm107 = vcmask 261120
    %v109 = vsel %vm107, %v79, 0
    %v112 = vsel %vm107, %v80, 0
    %v115 = vsel %vm107, %v81, 0
    %v118 = vsel %vm107, %v82, 0
    %v121 = vsel %vm107, %v83, 0
    %v124 = vsel %vm107, %v84, 0
    %v127 = vsel %vm107, %v85, 0
    %v130 = vsel %vm107, %v86, 0
    %132 = vmatprep.subr.mxu0 0.0
    %133 = vmatpush1.msra.mxu0 0.0
    %134 = vmatprep.subr.mxu0 0.0
    %135 = vmatpush1.msra.mxu0 0.0
    %136 = vmatprep.subr.mxu0 0.0
    %137 = vmatpush1.msra.mxu0 0.0
    %138 = vmatprep.subr.mxu0 0.0
    %139 = vmatpush1.msra.mxu0 0.0
    %140 = vmatprep.subr.mxu0 0.0
    %141 = vmatpush1.msra.mxu0 0.0
    %142 = vmatprep.subr.mxu0 0.0
    %143 = vmatpush1.msra.mxu0 0.0
    %144 = vmatprep.subr.mxu0 0.0
    %145 = vmatpush1.msra.mxu0 0.0
    %146 = vmatprep.subr.mxu0 0.0
    %147 = vmatpush1.msra.mxu0 0.0
    %148 = vmatprep.subr.mxu0 0.0
    %149 = vmatpush1.msra.mxu0 0.0
    %150 = vmatprep.subr.mxu0 0.0
    %151 = vmatpush1.msra.mxu0 0.0
    %152 = vmatprep.subr.mxu0 0.0
    %153 = vmatpush1.msra.mxu0 0.0
    %154 = vmatprep.subr.mxu0 0.0
    %155 = vmatpush1.msra.mxu0 0.0
    %156 = vmatprep.subr.mxu0 %v94
    %157 = vmatpush1.msra.mxu0 %v93
    %158 = vmatprep.subr.mxu0 %v92
    %159 = vmatpush1.msra.mxu0 %v91
    %160 = vmatprep.subr.mxu0 %v90
    %161 = vmatpush1.msra.mxu0 %v89
    %162 = vmatprep.subr.mxu0 %v88
    %163 = vmatpush1.msra.mxu0 %v87
    %164 = vmatprep.subr.mxu0 0.0
    %165 = vmatpush2.msra.mxu0 0.0
    %166 = vmatprep.subr.mxu0 0.0
    %167 = vmatpush2.msra.mxu0 0.0
    %168 = vmatprep.subr.mxu0 0.0
    %169 = vmatpush2.msra.mxu0 0.0
    %170 = vmatprep.subr.mxu0 0.0
    %171 = vmatpush2.msra.mxu0 0.0
    %172 = vmatprep.subr.mxu0 0.0
    %173 = vmatpush2.msra.mxu0 0.0
    %174 = vmatprep.subr.mxu0 0.0
    %175 = vmatpush2.msra.mxu0 0.0
    %176 = vmatprep.subr.mxu0 0.0
    %177 = vmatpush2.msra.mxu0 0.0
    %178 = vmatprep.subr.mxu0 0.0
    %179 = vmatpush2.msra.mxu0 0.0
    %180 = vmatprep.subr.mxu0 0.0
    %181 = vmatpush2.msra.mxu0 0.0
    %182 = vmatprep.subr.mxu0 0.0
    %183 = vmatpush2.msra.mxu0 0.0
    %184 = vmatprep.subr.mxu0 0.0
    %185 = vmatpush2.msra.mxu0 0.0
    %186 = vmatprep.subr.mxu0 0.0
    %187 = vmatpush2.msra.mxu0 0.0
    %188 = vmatprep.subr.mxu0 0.0
    %189 = vmatpush2.msra.mxu0 0.0
    %190 = vmatprep.subr.mxu0 0.0
    %191 = vmatpush2.msra.mxu0 0.0
    %192 = vmatprep.subr.mxu0 0.0
    %193 = vmatpush2.msra.mxu0 0.0
    %194 = vmatprep.subr.mxu0 0.0
    %195 = vmatpush2.msra.mxu0 0.0
    %196 = vmatprep.mubr.f32.mxu0 0.0
    %197 = vmatmul.mubr.f32.gmra.mxu0 %v109
    %v198 = vpop.f32.mrf.mxu0
    %v199 = vadd.f32 %v100, %v198
    %v200 = vpop.f32.mrf.mxu0
    %v201 = vadd.f32 %v104, %v200
    %202 = vmatprep.mubr.f32.mxu0 0.0
    %203 = vmatmul.mubr.f32.gmra.mxu0 %v112
    %v204 = vpop.f32.mrf.mxu0
    %v205 = vadd.f32 %v100, %v204
    %v206 = vpop.f32.mrf.mxu0
    %v207 = vadd.f32 %v104, %v206
    %208 = vmatprep.mubr.f32.mxu0 0.0
    %209 = vmatmul.mubr.f32.gmra.mxu0 %v115
    %v210 = vpop.f32.mrf.mxu0
    %v211 = vadd.f32 %v100, %v210
    %v212 = vpop.f32.mrf.mxu0
    %v213 = vadd.f32 %v104, %v212
    %214 = vmatprep.mubr.f32.mxu0 0.0
    %215 = vmatmul.mubr.f32.gmra.mxu0 %v118
    %v216 = vpop.f32.mrf.mxu0
    %v217 = vadd.f32 %v100, %v216
    %v218 = vpop.f32.mrf.mxu0
    %v219 = vadd.f32 %v104, %v218
    %220 = vmatprep.mubr.f32.mxu0 0.0
    %221 = vmatmul.mubr.f32.gmra.mxu0 %v121
    %v222 = vpop.f32.mrf.mxu0
    %v223 = vadd.f32 %v100, %v222
    %v224 = vpop.f32.mrf.mxu0
    %v225 = vadd.f32 %v104, %v224
    %226 = vmatprep.mubr.f32.mxu0 0.0
    %227 = vmatmul.mubr.f32.gmra.mxu0 %v124
    %v228 = vpop.f32.mrf.mxu0
    %v229 = vadd.f32 %v100, %v228
    %v230 = vpop.f32.mrf.mxu0
    %v231 = vadd.f32 %v104, %v230
    %232 = vmatprep.mubr.f32.mxu0 0.0
    %233 = vmatmul.mubr.f32.gmra.mxu0 %v127
    %v234 = vpop.f32.mrf.mxu0
    %v235 = vadd.f32 %v100, %v234
    %v236 = vpop.f32.mrf.mxu0
    %v237 = vadd.f32 %v104, %v236
    %238 = vmatprep.mubr.f32.mxu0 0.0
    %239 = vmatmul.mubr.f32.gmra.mxu0 %v130
    %v240 = vpop.f32.mrf.mxu0
    %v241 = vadd.f32 %v100, %v240
    %v242 = vpop.f32.mrf.mxu0
    %v243 = vadd.f32 %v104, %v242
    %244 = vdwg.mxu0
    %v245 = vld [vmem:[%s3] sm:$0xff]
    %v246 = vld [vmem:[%s3 + $0x8] sm:$0xff]
    %v247 = vld [vmem:[%s3 + $0x10] sm:$0xff]
    %v248 = vld [vmem:[%s3 + $0x18] sm:$0xff]
    %v249 = vld [vmem:[%s3 + $0x20] sm:$0xff]
    %v250 = vld [vmem:[%s3 + $0x28] sm:$0xff]
    %v251 = vld [vmem:[%s3 + $0x30] sm:$0xff]
    %v252 = vld [vmem:[%s3 + $0x38] sm:$0xff]
    %v253 = vld [vmem:[%s3 + $0x40] sm:$0xff]
    %v254 = vld [vmem:[%s3 + $0x48] sm:$0xff]
    %v255 = vld [vmem:[%s3 + $0x50] sm:$0xff]
    %v256 = vld [vmem:[%s3 + $0x58] sm:$0xff]
    %v257 = vld [vmem:[%s3 + $0x60] sm:$0xff]
    %v258 = vld [vmem:[%s3 + $0x68] sm:$0xff]
    %v259 = vld [vmem:[%s3 + $0x70] sm:$0xff]
    %v260 = vld [vmem:[%s3 + $0x78] sm:$0xff]
    %vm261 = vcmask 523264
    %v263 = vsel %vm261, 0.0, 0
    %265 = vmatprep.subr.mxu0 0.0
    %266 = vmatpush1.msra.mxu0 0.0
    %267 = vmatprep.subr.mxu0 0.0
    %268 = vmatpush1.msra.mxu0 0.0
    %269 = vmatprep.subr.mxu0 0.0
    %270 = vmatpush1.msra.mxu0 0.0
    %271 = vmatprep.subr.mxu0 0.0
    %272 = vmatpush1.msra.mxu0 0.0
    %273 = vmatprep.subr.mxu0 0.0
    %274 = vmatpush1.msra.mxu0 0.0
    %275 = vmatprep.subr.mxu0 0.0
    %276 = vmatpush1.msra.mxu0 0.0
    %277 = vmatprep.subr.mxu0 0.0
    %278 = vmatpush1.msra.mxu0 0.0
    %279 = vmatprep.subr.mxu0 0.0
    %280 = vmatpush1.msra.mxu0 0.0
    %281 = vmatprep.subr.mxu0 %v260
    %282 = vmatpush1.msra.mxu0 %v259
    %283 = vmatprep.subr.mxu0 %v258
    %284 = vmatpush1.msra.mxu0 %v257
    %285 = vmatprep.subr.mxu0 %v256
    %286 = vmatpush1.msra.mxu0 %v255
    %287 = vmatprep.subr.mxu0 %v254
    %288 = vmatpush1.msra.mxu0 %v253
    %289 = vmatprep.subr.mxu0 %v252
    %290 = vmatpush1.msra.mxu0 %v251
    %291 = vmatprep.subr.mxu0 %v250
    %292 = vmatpush1.msra.mxu0 %v249
    %293 = vmatprep.subr.mxu0 %v248
    %294 = vmatpush1.msra.mxu0 %v247
    %295 = vmatprep.subr.mxu0 %v246
    %296 = vmatpush1.msra.mxu0 %v245
    %297 = vmatprep.subr.mxu0 0.0
    %298 = vmatpush2.msra.mxu0 0.0
    %299 = vmatprep.subr.mxu0 0.0
    %300 = vmatpush2.msra.mxu0 0.0
    %301 = vmatprep.subr.mxu0 0.0
    %302 = vmatpush2.msra.mxu0 0.0
    %303 = vmatprep.subr.mxu0 0.0
    %304 = vmatpush2.msra.mxu0 0.0
    %305 = vmatprep.subr.mxu0 0.0
    %306 = vmatpush2.msra.mxu0 0.0
    %307 = vmatprep.subr.mxu0 0.0
    %308 = vmatpush2.msra.mxu0 0.0
    %309 = vmatprep.subr.mxu0 0.0
    %310 = vmatpush2.msra.mxu0 0.0
    %311 = vmatprep.subr.mxu0 0.0
    %312 = vmatpush2.msra.mxu0 0.0
    %313 = vmatprep.subr.mxu0 0.0
    %314 = vmatpush2.msra.mxu0 0.0
    %315 = vmatprep.subr.mxu0 0.0
    %316 = vmatpush2.msra.mxu0 0.0
    %317 = vmatprep.subr.mxu0 0.0
    %318 = vmatpush2.msra.mxu0 0.0
    %319 = vmatprep.subr.mxu0 0.0
    %320 = vmatpush2.msra.mxu0 0.0
    %321 = vmatprep.subr.mxu0 0.0
    %322 = vmatpush2.msra.mxu0 0.0
    %323 = vmatprep.subr.mxu0 0.0
    %324 = vmatpush2.msra.mxu0 0.0
    %325 = vmatprep.subr.mxu0 0.0
    %326 = vmatpush2.msra.mxu0 0.0
    %327 = vmatprep.subr.mxu0 0.0
    %328 = vmatpush2.msra.mxu0 0.0
    %329 = vmatprep.mubr.f32.mxu0 0.0
    %330 = vmatmul.mubr.f32.gmra.mxu0 %v263
    %v331 = vpop.f32.mrf.mxu0
    %v332 = vadd.f32 0.0, %v331
    %v333 = vpop.f32.mrf.mxu0
    %v334 = vadd.f32 0.0, %v333
    %335 = vdwg.mxu0
    %v336 = vadd.f32 %v199, %v332
    %v337 = vadd.f32 %v201, %v334
    %v338 = vtanh.pop %v336
    %v339 = vtanh.pop %v337
    %v340 = vmul.f32 %v338, 0.5
    %v341 = vmul.f32 %v339, 0.5
    %v342 = vadd.f32 %v340, 0.5
    %v343 = vadd.f32 %v341, 0.5
    %v344 = vmul.f32 %v342, 0.0
    %346 = vrot.lane.b32.xlu0 %v339, 64
    %v347 = vpop.permute.xlu0 %346
    %v349 = vmul.f32 %v342, %v347
    %351 = vrot.lane.b32.xlu0 %v349, 64
    %v352 = vpop.permute.xlu0 %351
    %v354 = vadd.f32 %v344, %v352
    %v355 = vtanh.pop %v354
    %357 = vrot.lane.b32.xlu0 %v355, 64
    %v358 = vpop.permute.xlu0 %357
    %v360 = vmul.f32 %v343, %v358
    %v362 = vsel %vm261, %v360, 0
    %364 = vmatprep.subr.mxu0 0.0
    %365 = vmatpush1.msra.mxu0 0.0
    %366 = vmatprep.subr.mxu0 0.0
    %367 = vmatpush1.msra.mxu0 0.0
    %368 = vmatprep.subr.mxu0 0.0
    %369 = vmatpush1.msra.mxu0 0.0
    %370 = vmatprep.subr.mxu0 0.0
    %371 = vmatpush1.msra.mxu0 0.0
    %372 = vmatprep.subr.mxu0 0.0
    %373 = vmatpush1.msra.mxu0 0.0
    %374 = vmatprep.subr.mxu0 0.0
    %375 = vmatpush1.msra.mxu0 0.0
    %376 = vmatprep.subr.mxu0 0.0
    %377 = vmatpush1.msra.mxu0 0.0
    %378 = vmatprep.subr.mxu0 0.0
    %379 = vmatpush1.msra.mxu0 0.0
    %380 = vmatprep.subr.mxu0 %v260
    %381 = vmatpush1.msra.mxu0 %v259
    %382 = vmatprep.subr.mxu0 %v258
    %383 = vmatpush1.msra.mxu0 %v257
    %384 = vmatprep.subr.mxu0 %v256
    %385 = vmatpush1.msra.mxu0 %v255
    %386 = vmatprep.subr.mxu0 %v254
    %387 = vmatpush1.msra.mxu0 %v253
    %388 = vmatprep.subr.mxu0 %v252
    %389 = vmatpush1.msra.mxu0 %v251
    %390 = vmatprep.subr.mxu0 %v250
    %391 = vmatpush1.msra.mxu0 %v249
    %392 = vmatprep.subr.mxu0 %v248
    %393 = vmatpush1.msra.mxu0 %v247
    %394 = vmatprep.subr.mxu0 %v246
    %395 = vmatpush1.msra.mxu0 %v245
    %396 = vmatprep.subr.mxu0 0.0
    %397 = vmatpush2.msra.mxu0 0.0
    %398 = vmatprep.subr.mxu0 0.0
    %399 = vmatpush2.msra.mxu0 0.0
    %400 = vmatprep.subr.mxu0 0.0
    %401 = vmatpush2.msra.mxu0 0.0
    %402 = vmatprep.subr.mxu0 0.0
    %403 = vmatpush2.msra.mxu0 0.0
    %404 = vmatprep.subr.mxu0 0.0
    %405 = vmatpush2.msra.mxu0 0.0
    %406 = vmatprep.subr.mxu0 0.0
    %407 = vmatpush2.msra.mxu0 0.0
    %408 = vmatprep.subr.mxu0 0.0
    %409 = vmatpush2.msra.mxu0 0.0
    %410 = vmatprep.subr.mxu0 0.0
    %411 = vmatpush2.msra.mxu0 0.0
    %412 = vmatprep.subr.mxu0 0.0
    %413 = vmatpush2.msra.mxu0 0.0
    %414 = vmatprep.subr.mxu0 0.0
    %415 = vmatpush2.msra.mxu0 0.0
    %416 = vmatprep.subr.mxu0 0.0
    %417 = vmatpush2.msra.mxu0 0.0
    %418 = vmatprep.subr.mxu0 0.0
    %419 = vmatpush2.msra.mxu0 0.0
    %420 = vmatprep.subr.mxu0 0.0
    %421 = vmatpush2.msra.mxu0 0.0
    %422 = vmatprep.subr.mxu0 0.0
    %423 = vmatpush2.msra.mxu0 0.0
    %424 = vmatprep.subr.mxu0 0.0
    %425 = vmatpush2.msra.mxu0 0.0
    %426 = vmatprep.subr.mxu0 0.0
    %427 = vmatpush2.msra.mxu0 0.0
    %428 = vmatprep.mubr.f32.mxu0 0.0
    %429 = vmatmul.mubr.f32.gmra.mxu0 %v362
    %v430 = vpop.f32.mrf.mxu0
    %v431 = vadd.f32 0.0, %v430
    %v432 = vpop.f32.mrf.mxu0
    %v433 = vadd.f32 0.0, %v432
    %434 = vdwg.mxu0
    %v435 = vadd.f32 %v205, %v431
    %v436 = vadd.f32 %v207, %v433
    %v437 = vtanh.pop %v435
    %v438 = vtanh.pop %v436
    %v439 = vmul.f32 %v437, 0.5
    %v440 = vmul.f32 %v438, 0.5
    %v441 = vadd.f32 %v439, 0.5
    %v442 = vadd.f32 %v440, 0.5
    %v443 = vmul.f32 %v441, %v354
    %445 = vrot.lane.b32.xlu0 %v438, 64
    %v446 = vpop.permute.xlu0 %445
    %v448 = vmul.f32 %v441, %v446
    %450 = vrot.lane.b32.xlu0 %v448, 64
    %v451 = vpop.permute.xlu0 %450
    %v453 = vadd.f32 %v443, %v451
    %v454 = vtanh.pop %v453
    %456 = vrot.lane.b32.xlu0 %v454, 64
    %v457 = vpop.permute.xlu0 %456
    %v459 = vmul.f32 %v442, %v457
    %v461 = vsel %vm261, %v459, 0
    %463 = vmatprep.subr.mxu0 0.0
    %464 = vmatpush1.msra.mxu0 0.0
    %465 = vmatprep.subr.mxu0 0.0
    %466 = vmatpush1.msra.mxu0 0.0
    %467 = vmatprep.subr.mxu0 0.0
    %468 = vmatpush1.msra.mxu0 0.0
    %469 = vmatprep.subr.mxu0 0.0
    %470 = vmatpush1.msra.mxu0 0.0
    %471 = vmatprep.subr.mxu0 0.0
    %472 = vmatpush1.msra.mxu0 0.0
    %473 = vmatprep.subr.mxu0 0.0
    %474 = vmatpush1.msra.mxu0 0.0
    %475 = vmatprep.subr.mxu0 0.0
    %476 = vmatpush1.msra.mxu0 0.0
    %477 = vmatprep.subr.mxu0 0.0
    %478 = vmatpush1.msra.mxu0 0.0
    %479 = vmatprep.subr.mxu0 %v260
    %480 = vmatpush1.msra.mxu0 %v259
    %481 = vmatprep.subr.mxu0 %v258
    %482 = vmatpush1.msra.mxu0 %v257
    %483 = vmatprep.subr.mxu0 %v256
    %484 = vmatpush1.msra.mxu0 %v255
    %485 = vmatprep.subr.mxu0 %v254
    %486 = vmatpush1.msra.mxu0 %v253
    %487 = vmatprep.subr.mxu0 %v252
    %488 = vmatpush1.msra.mxu0 %v251
    %489 = vmatprep.subr.mxu0 %v250
    %490 = vmatpush1.msra.mxu0 %v249
    %491 = vmatprep.subr.mxu0 %v248
    %492 = vmatpush1.msra.mxu0 %v247
    %493 = vmatprep.subr.mxu0 %v246
    %494 = vmatpush1.msra.mxu0 %v245
    %495 = vmatprep.subr.mxu0 0.0
    %496 = vmatpush2.msra.mxu0 0.0
    %497 = vmatprep.subr.mxu0 0.0
    %498 = vmatpush2.msra.mxu0 0.0
    %499 = vmatprep.subr.mxu0 0.0
    %500 = vmatpush2.msra.mxu0 0.0
    %501 = vmatprep.subr.mxu0 0.0
    %502 = vmatpush2.msra.mxu0 0.0
    %503 = vmatprep.subr.mxu0 0.0
    %504 = vmatpush2.msra.mxu0 0.0
    %505 = vmatprep.subr.mxu0 0.0
    %506 = vmatpush2.msra.mxu0 0.0
    %507 = vmatprep.subr.mxu0 0.0
    %508 = vmatpush2.msra.mxu0 0.0
    %509 = vmatprep.subr.mxu0 0.0
    %510 = vmatpush2.msra.mxu0 0.0
    %511 = vmatprep.subr.mxu0 0.0
    %512 = vmatpush2.msra.mxu0 0.0
    %513 = vmatprep.subr.mxu0 0.0
    %514 = vmatpush2.msra.mxu0 0.0
    %515 = vmatprep.subr.mxu0 0.0
    %516 = vmatpush2.msra.mxu0 0.0
    %517 = vmatprep.subr.mxu0 0.0
    %518 = vmatpush2.msra.mxu0 0.0
    %519 = vmatprep.subr.mxu0 0.0
    %520 = vmatpush2.msra.mxu0 0.0
    %521 = vmatprep.subr.mxu0 0.0
    %522 = vmatpush2.msra.mxu0 0.0
    %523 = vmatprep.subr.mxu0 0.0
    %524 = vmatpush2.msra.mxu0 0.0
    %525 = vmatprep.subr.mxu0 0.0
    %526 = vmatpush2.msra.mxu0 0.0
    %527 = vmatprep.mubr.f32.mxu0 0.0
    %528 = vmatmul.mubr.f32.gmra.mxu0 %v461
    %v529 = vpop.f32.mrf.mxu0
    %v530 = vadd.f32 0.0, %v529
    %v531 = vpop.f32.mrf.mxu0
    %v532 = vadd.f32 0.0, %v531
    %533 = vdwg.mxu0
    %v534 = vadd.f32 %v211, %v530
    %v535 = vadd.f32 %v213, %v532
    %v536 = vtanh.pop %v534
    %v537 = vtanh.pop %v535
    %v538 = vmul.f32 %v536, 0.5
    %v539 = vmul.f32 %v537, 0.5
    %v540 = vadd.f32 %v538, 0.5
    %v541 = vadd.f32 %v539, 0.5
    %v542 = vmul.f32 %v540, %v453
    %544 = vrot.lane.b32.xlu0 %v537, 64
    %v545 = vpop.permute.xlu0 %544
    %v547 = vmul.f32 %v540, %v545
    %549 = vrot.lane.b32.xlu0 %v547, 64
    %v550 = vpop.permute.xlu0 %549
    %v552 = vadd.f32 %v542, %v550
    %v553 = vtanh.pop %v552
    %555 = vrot.lane.b32.xlu0 %v553, 64
    %v556 = vpop.permute.xlu0 %555
    %v558 = vmul.f32 %v541, %v556
    %v560 = vsel %vm261, %v558, 0
    %562 = vmatprep.subr.mxu0 0.0
    %563 = vmatpush1.msra.mxu0 0.0
    %564 = vmatprep.subr.mxu0 0.0
    %565 = vmatpush1.msra.mxu0 0.0
    %566 = vmatprep.subr.mxu0 0.0
    %567 = vmatpush1.msra.mxu0 0.0
    %568 = vmatprep.subr.mxu0 0.0
    %569 = vmatpush1.msra.mxu0 0.0
    %570 = vmatprep.subr.mxu0 0.0
    %571 = vmatpush1.msra.mxu0 0.0
    %572 = vmatprep.subr.mxu0 0.0
    %573 = vmatpush1.msra.mxu0 0.0
    %574 = vmatprep.subr.mxu0 0.0
    %575 = vmatpush1.msra.mxu0 0.0
    %576 = vmatprep.subr.mxu0 0.0
    %577 = vmatpush1.msra.mxu0 0.0
    %578 = vmatprep.subr.mxu0 %v260
    %579 = vmatpush1.msra.mxu0 %v259
    %580 = vmatprep.subr.mxu0 %v258
    %581 = vmatpush1.msra.mxu0 %v257
    %582 = vmatprep.subr.mxu0 %v256
    %583 = vmatpush1.msra.mxu0 %v255
    %584 = vmatprep.subr.mxu0 %v254
    %585 = vmatpush1.msra.mxu0 %v253
    %586 = vmatprep.subr.mxu0 %v252
    %587 = vmatpush1.msra.mxu0 %v251
    %588 = vmatprep.subr.mxu0 %v250
    %589 = vmatpush1.msra.mxu0 %v249
    %590 = vmatprep.subr.mxu0 %v248
    %591 = vmatpush1.msra.mxu0 %v247
    %592 = vmatprep.subr.mxu0 %v246
    %593 = vmatpush1.msra.mxu0 %v245
    %594 = vmatprep.subr.mxu0 0.0
    %595 = vmatpush2.msra.mxu0 0.0
    %596 = vmatprep.subr.mxu0 0.0
    %597 = vmatpush2.msra.mxu0 0.0
    %598 = vmatprep.subr.mxu0 0.0
    %599 = vmatpush2.msra.mxu0 0.0
    %600 = vmatprep.subr.mxu0 0.0
    %601 = vmatpush2.msra.mxu0 0.0
    %602 = vmatprep.subr.mxu0 0.0
    %603 = vmatpush2.msra.mxu0 0.0
    %604 = vmatprep.subr.mxu0 0.0
    %605 = vmatpush2.msra.mxu0 0.0
    %606 = vmatprep.subr.mxu0 0.0
    %607 = vmatpush2.msra.mxu0 0.0
    %608 = vmatprep.subr.mxu0 0.0
    %609 = vmatpush2.msra.mxu0 0.0
    %610 = vmatprep.subr.mxu0 0.0
    %611 = vmatpush2.msra.mxu0 0.0
    %612 = vmatprep.subr.mxu0 0.0
    %613 = vmatpush2.msra.mxu0 0.0
    %614 = vmatprep.subr.mxu0 0.0
    %615 = vmatpush2.msra.mxu0 0.0
    %616 = vmatprep.subr.mxu0 0.0
    %617 = vmatpush2.msra.mxu0 0.0
    %618 = vmatprep.subr.mxu0 0.0
    %619 = vmatpush2.msra.mxu0 0.0
    %620 = vmatprep.subr.mxu0 0.0
    %621 = vmatpush2.msra.mxu0 0.0
    %622 = vmatprep.subr.mxu0 0.0
    %623 = vmatpush2.msra.mxu0 0.0
    %624 = vmatprep.subr.mxu0 0.0
    %625 = vmatpush2.msra.mxu0 0.0
    %626 = vmatprep.mubr.f32.mxu0 0.0
    %627 = vmatmul.mubr.f32.gmra.mxu0 %v560
    %v628 = vpop.f32.mrf.mxu0
    %v629 = vadd.f32 0.0, %v628
    %v630 = vpop.f32.mrf.mxu0
    %v631 = vadd.f32 0.0, %v630
    %632 = vdwg.mxu0
    %v633 = vadd.f32 %v217, %v629
    %v634 = vadd.f32 %v219, %v631
    %v635 = vtanh.pop %v633
    %v636 = vtanh.pop %v634
    %v637 = vmul.f32 %v635, 0.5
    %v638 = vmul.f32 %v636, 0.5
    %v639 = vadd.f32 %v637, 0.5
    %v640 = vadd.f32 %v638, 0.5
    %v641 = vmul.f32 %v639, %v552
    %643 = vrot.lane.b32.xlu0 %v636, 64
    %v644 = vpop.permute.xlu0 %643
    %v646 = vmul.f32 %v639, %v644
    %648 = vrot.lane.b32.xlu0 %v646, 64
    %v649 = vpop.permute.xlu0 %648
    %v651 = vadd.f32 %v641, %v649
    %v652 = vtanh.pop %v651
    %654 = vrot.lane.b32.xlu0 %v652, 64
    %v655 = vpop.permute.xlu0 %654
    %v657 = vmul.f32 %v640, %v655
    %v659 = vsel %vm261, %v657, 0
    %661 = vmatprep.subr.mxu0 0.0
    %662 = vmatpush1.msra.mxu0 0.0
    %663 = vmatprep.subr.mxu0 0.0
    %664 = vmatpush1.msra.mxu0 0.0
    %665 = vmatprep.subr.mxu0 0.0
    %666 = vmatpush1.msra.mxu0 0.0
    %667 = vmatprep.subr.mxu0 0.0
    %668 = vmatpush1.msra.mxu0 0.0
    %669 = vmatprep.subr.mxu0 0.0
    %670 = vmatpush1.msra.mxu0 0.0
    %671 = vmatprep.subr.mxu0 0.0
    %672 = vmatpush1.msra.mxu0 0.0
    %673 = vmatprep.subr.mxu0 0.0
    %674 = vmatpush1.msra.mxu0 0.0
    %675 = vmatprep.subr.mxu0 0.0
    %676 = vmatpush1.msra.mxu0 0.0
    %677 = vmatprep.subr.mxu0 %v260
    %678 = vmatpush1.msra.mxu0 %v259
    %679 = vmatprep.subr.mxu0 %v258
    %680 = vmatpush1.msra.mxu0 %v257
    %681 = vmatprep.subr.mxu0 %v256
    %682 = vmatpush1.msra.mxu0 %v255
    %683 = vmatprep.subr.mxu0 %v254
    %684 = vmatpush1.msra.mxu0 %v253
    %685 = vmatprep.subr.mxu0 %v252
    %686 = vmatpush1.msra.mxu0 %v251
    %687 = vmatprep.subr.mxu0 %v250
    %688 = vmatpush1.msra.mxu0 %v249
    %689 = vmatprep.subr.mxu0 %v248
    %690 = vmatpush1.msra.mxu0 %v247
    %691 = vmatprep.subr.mxu0 %v246
    %692 = vmatpush1.msra.mxu0 %v245
    %693 = vmatprep.subr.mxu0 0.0
    %694 = vmatpush2.msra.mxu0 0.0
    %695 = vmatprep.subr.mxu0 0.0
    %696 = vmatpush2.msra.mxu0 0.0
    %697 = vmatprep.subr.mxu0 0.0
    %698 = vmatpush2.msra.mxu0 0.0
    %699 = vmatprep.subr.mxu0 0.0
    %700 = vmatpush2.msra.mxu0 0.0
    %701 = vmatprep.subr.mxu0 0.0
    %702 = vmatpush2.msra.mxu0 0.0
    %703 = vmatprep.subr.mxu0 0.0
    %704 = vmatpush2.msra.mxu0 0.0
    %705 = vmatprep.subr.mxu0 0.0
    %706 = vmatpush2.msra.mxu0 0.0
    %707 = vmatprep.subr.mxu0 0.0
    %708 = vmatpush2.msra.mxu0 0.0
    %709 = vmatprep.subr.mxu0 0.0
    %710 = vmatpush2.msra.mxu0 0.0
    %711 = vmatprep.subr.mxu0 0.0
    %712 = vmatpush2.msra.mxu0 0.0
    %713 = vmatprep.subr.mxu0 0.0
    %714 = vmatpush2.msra.mxu0 0.0
    %715 = vmatprep.subr.mxu0 0.0
    %716 = vmatpush2.msra.mxu0 0.0
    %717 = vmatprep.subr.mxu0 0.0
    %718 = vmatpush2.msra.mxu0 0.0
    %719 = vmatprep.subr.mxu0 0.0
    %720 = vmatpush2.msra.mxu0 0.0
    %721 = vmatprep.subr.mxu0 0.0
    %722 = vmatpush2.msra.mxu0 0.0
    %723 = vmatprep.subr.mxu0 0.0
    %724 = vmatpush2.msra.mxu0 0.0
    %725 = vmatprep.mubr.f32.mxu0 0.0
    %726 = vmatmul.mubr.f32.gmra.mxu0 %v659
    %v727 = vpop.f32.mrf.mxu0
    %v728 = vadd.f32 0.0, %v727
    %v729 = vpop.f32.mrf.mxu0
    %v730 = vadd.f32 0.0, %v729
    %731 = vdwg.mxu0
    %v732 = vadd.f32 %v223, %v728
    %v733 = vadd.f32 %v225, %v730
    %v734 = vtanh.pop %v732
    %v735 = vtanh.pop %v733
    %v736 = vmul.f32 %v734, 0.5
    %v737 = vmul.f32 %v735, 0.5
    %v738 = vadd.f32 %v736, 0.5
    %v739 = vadd.f32 %v737, 0.5
    %v740 = vmul.f32 %v738, %v651
    %742 = vrot.lane.b32.xlu0 %v735, 64
    %v743 = vpop.permute.xlu0 %742
    %v745 = vmul.f32 %v738, %v743
    %747 = vrot.lane.b32.xlu0 %v745, 64
    %v748 = vpop.permute.xlu0 %747
    %v750 = vadd.f32 %v740, %v748
    %v751 = vtanh.pop %v750
    %753 = vrot.lane.b32.xlu0 %v751, 64
    %v754 = vpop.permute.xlu0 %753
    %v756 = vmul.f32 %v739, %v754
    %v758 = vsel %vm261, %v756, 0
    %760 = vmatprep.subr.mxu0 0.0
    %761 = vmatpush1.msra.mxu0 0.0
    %762 = vmatprep.subr.mxu0 0.0
    %763 = vmatpush1.msra.mxu0 0.0
    %764 = vmatprep.subr.mxu0 0.0
    %765 = vmatpush1.msra.mxu0 0.0
    %766 = vmatprep.subr.mxu0 0.0
    %767 = vmatpush1.msra.mxu0 0.0
    %768 = vmatprep.subr.mxu0 0.0
    %769 = vmatpush1.msra.mxu0 0.0
    %770 = vmatprep.subr.mxu0 0.0
    %771 = vmatpush1.msra.mxu0 0.0
    %772 = vmatprep.subr.mxu0 0.0
    %773 = vmatpush1.msra.mxu0 0.0
    %774 = vmatprep.subr.mxu0 0.0
    %775 = vmatpush1.msra.mxu0 0.0
    %776 = vmatprep.subr.mxu0 %v260
    %777 = vmatpush1.msra.mxu0 %v259
    %778 = vmatprep.subr.mxu0 %v258
    %779 = vmatpush1.msra.mxu0 %v257
    %780 = vmatprep.subr.mxu0 %v256
    %781 = vmatpush1.msra.mxu0 %v255
    %782 = vmatprep.subr.mxu0 %v254
    %783 = vmatpush1.msra.mxu0 %v253
    %784 = vmatprep.subr.mxu0 %v252
    %785 = vmatpush1.msra.mxu0 %v251
    %786 = vmatprep.subr.mxu0 %v250
    %787 = vmatpush1.msra.mxu0 %v249
    %788 = vmatprep.subr.mxu0 %v248
    %789 = vmatpush1.msra.mxu0 %v247
    %790 = vmatprep.subr.mxu0 %v246
    %791 = vmatpush1.msra.mxu0 %v245
    %792 = vmatprep.subr.mxu0 0.0
    %793 = vmatpush2.msra.mxu0 0.0
    %794 = vmatprep.subr.mxu0 0.0
    %795 = vmatpush2.msra.mxu0 0.0
    %796 = vmatprep.subr.mxu0 0.0
    %797 = vmatpush2.msra.mxu0 0.0
    %798 = vmatprep.subr.mxu0 0.0
    %799 = vmatpush2.msra.mxu0 0.0
    %800 = vmatprep.subr.mxu0 0.0
    %801 = vmatpush2.msra.mxu0 0.0
    %802 = vmatprep.subr.mxu0 0.0
    %803 = vmatpush2.msra.mxu0 0.0
    %804 = vmatprep.subr.mxu0 0.0
    %805 = vmatpush2.msra.mxu0 0.0
    %806 = vmatprep.subr.mxu0 0.0
    %807 = vmatpush2.msra.mxu0 0.0
    %808 = vmatprep.subr.mxu0 0.0
    %809 = vmatpush2.msra.mxu0 0.0
    %810 = vmatprep.subr.mxu0 0.0
    %811 = vmatpush2.msra.mxu0 0.0
    %812 = vmatprep.subr.mxu0 0.0
    %813 = vmatpush2.msra.mxu0 0.0
    %814 = vmatprep.subr.mxu0 0.0
    %815 = vmatpush2.msra.mxu0 0.0
    %816 = vmatprep.subr.mxu0 0.0
    %817 = vmatpush2.msra.mxu0 0.0
    %818 = vmatprep.subr.mxu0 0.0
    %819 = vmatpush2.msra.mxu0 0.0
    %820 = vmatprep.subr.mxu0 0.0
    %821 = vmatpush2.msra.mxu0 0.0
    %822 = vmatprep.subr.mxu0 0.0
    %823 = vmatpush2.msra.mxu0 0.0
    %824 = vmatprep.mubr.f32.mxu0 0.0
    %825 = vmatmul.mubr.f32.gmra.mxu0 %v758
    %v826 = vpop.f32.mrf.mxu0
    %v827 = vadd.f32 0.0, %v826
    %v828 = vpop.f32.mrf.mxu0
    %v829 = vadd.f32 0.0, %v828
    %830 = vdwg.mxu0
    %v831 = vadd.f32 %v229, %v827
    %v832 = vadd.f32 %v231, %v829
    %v833 = vtanh.pop %v831
    %v834 = vtanh.pop %v832
    %v835 = vmul.f32 %v833, 0.5
    %v836 = vmul.f32 %v834, 0.5
    %v837 = vadd.f32 %v835, 0.5
    %v838 = vadd.f32 %v836, 0.5
    %v839 = vmul.f32 %v837, %v750
    %841 = vrot.lane.b32.xlu0 %v834, 64
    %v842 = vpop.permute.xlu0 %841
    %v844 = vmul.f32 %v837, %v842
    %846 = vrot.lane.b32.xlu0 %v844, 64
    %v847 = vpop.permute.xlu0 %846
    %v849 = vadd.f32 %v839, %v847
    %v850 = vtanh.pop %v849
    %852 = vrot.lane.b32.xlu0 %v850, 64
    %v853 = vpop.permute.xlu0 %852
    %v855 = vmul.f32 %v838, %v853
    %v857 = vsel %vm261, %v855, 0
    %859 = vmatprep.subr.mxu0 0.0
    %860 = vmatpush1.msra.mxu0 0.0
    %861 = vmatprep.subr.mxu0 0.0
    %862 = vmatpush1.msra.mxu0 0.0
    %863 = vmatprep.subr.mxu0 0.0
    %864 = vmatpush1.msra.mxu0 0.0
    %865 = vmatprep.subr.mxu0 0.0
    %866 = vmatpush1.msra.mxu0 0.0
    %867 = vmatprep.subr.mxu0 0.0
    %868 = vmatpush1.msra.mxu0 0.0
    %869 = vmatprep.subr.mxu0 0.0
    %870 = vmatpush1.msra.mxu0 0.0
    %871 = vmatprep.subr.mxu0 0.0
    %872 = vmatpush1.msra.mxu0 0.0
    %873 = vmatprep.subr.mxu0 0.0
    %874 = vmatpush1.msra.mxu0 0.0
    %875 = vmatprep.subr.mxu0 %v260
    %876 = vmatpush1.msra.mxu0 %v259
    %877 = vmatprep.subr.mxu0 %v258
    %878 = vmatpush1.msra.mxu0 %v257
    %879 = vmatprep.subr.mxu0 %v256
    %880 = vmatpush1.msra.mxu0 %v255
    %881 = vmatprep.subr.mxu0 %v254
    %882 = vmatpush1.msra.mxu0 %v253
    %883 = vmatprep.subr.mxu0 %v252
    %884 = vmatpush1.msra.mxu0 %v251
    %885 = vmatprep.subr.mxu0 %v250
    %886 = vmatpush1.msra.mxu0 %v249
    %887 = vmatprep.subr.mxu0 %v248
    %888 = vmatpush1.msra.mxu0 %v247
    %889 = vmatprep.subr.mxu0 %v246
    %890 = vmatpush1.msra.mxu0 %v245
    %891 = vmatprep.subr.mxu0 0.0
    %892 = vmatpush2.msra.mxu0 0.0
    %893 = vmatprep.subr.mxu0 0.0
    %894 = vmatpush2.msra.mxu0 0.0
    %895 = vmatprep.subr.mxu0 0.0
    %896 = vmatpush2.msra.mxu0 0.0
    %897 = vmatprep.subr.mxu0 0.0
    %898 = vmatpush2.msra.mxu0 0.0
    %899 = vmatprep.subr.mxu0 0.0
    %900 = vmatpush2.msra.mxu0 0.0
    %901 = vmatprep.subr.mxu0 0.0
    %902 = vmatpush2.msra.mxu0 0.0
    %903 = vmatprep.subr.mxu0 0.0
    %904 = vmatpush2.msra.mxu0 0.0
    %905 = vmatprep.subr.mxu0 0.0
    %906 = vmatpush2.msra.mxu0 0.0
    %907 = vmatprep.subr.mxu0 0.0
    %908 = vmatpush2.msra.mxu0 0.0
    %909 = vmatprep.subr.mxu0 0.0
    %910 = vmatpush2.msra.mxu0 0.0
    %911 = vmatprep.subr.mxu0 0.0
    %912 = vmatpush2.msra.mxu0 0.0
    %913 = vmatprep.subr.mxu0 0.0
    %914 = vmatpush2.msra.mxu0 0.0
    %915 = vmatprep.subr.mxu0 0.0
    %916 = vmatpush2.msra.mxu0 0.0
    %917 = vmatprep.subr.mxu0 0.0
    %918 = vmatpush2.msra.mxu0 0.0
    %919 = vmatprep.subr.mxu0 0.0
    %920 = vmatpush2.msra.mxu0 0.0
    %921 = vmatprep.subr.mxu0 0.0
    %922 = vmatpush2.msra.mxu0 0.0
    %923 = vmatprep.mubr.f32.mxu0 0.0
    %924 = vmatmul.mubr.f32.gmra.mxu0 %v857
    %v925 = vpop.f32.mrf.mxu0
    %v926 = vadd.f32 0.0, %v925
    %v927 = vpop.f32.mrf.mxu0
    %v928 = vadd.f32 0.0, %v927
    %929 = vdwg.mxu0
    %v930 = vadd.f32 %v235, %v926
    %v931 = vadd.f32 %v237, %v928
    %v932 = vtanh.pop %v930
    %v933 = vtanh.pop %v931
    %v934 = vmul.f32 %v932, 0.5
    %v935 = vmul.f32 %v933, 0.5
    %v936 = vadd.f32 %v934, 0.5
    %v937 = vadd.f32 %v935, 0.5
    %v938 = vmul.f32 %v936, %v849
    %940 = vrot.lane.b32.xlu0 %v933, 64
    %v941 = vpop.permute.xlu0 %940
    %v943 = vmul.f32 %v936, %v941
    %945 = vrot.lane.b32.xlu0 %v943, 64
    %v946 = vpop.permute.xlu0 %945
    %v948 = vadd.f32 %v938, %v946
    %v949 = vtanh.pop %v948
    %951 = vrot.lane.b32.xlu0 %v949, 64
    %v952 = vpop.permute.xlu0 %951
    %v954 = vmul.f32 %v937, %v952
    %v956 = vsel %vm261, %v954, 0
    %958 = vmatprep.subr.mxu0 0.0
    %959 = vmatpush1.msra.mxu0 0.0
    %960 = vmatprep.subr.mxu0 0.0
    %961 = vmatpush1.msra.mxu0 0.0
    %962 = vmatprep.subr.mxu0 0.0
    %963 = vmatpush1.msra.mxu0 0.0
    %964 = vmatprep.subr.mxu0 0.0
    %965 = vmatpush1.msra.mxu0 0.0
    %966 = vmatprep.subr.mxu0 0.0
    %967 = vmatpush1.msra.mxu0 0.0
    %968 = vmatprep.subr.mxu0 0.0
    %969 = vmatpush1.msra.mxu0 0.0
    %970 = vmatprep.subr.mxu0 0.0
    %971 = vmatpush1.msra.mxu0 0.0
    %972 = vmatprep.subr.mxu0 0.0
    %973 = vmatpush1.msra.mxu0 0.0
    %974 = vmatprep.subr.mxu0 %v260
    %975 = vmatpush1.msra.mxu0 %v259
    %976 = vmatprep.subr.mxu0 %v258
    %977 = vmatpush1.msra.mxu0 %v257
    %978 = vmatprep.subr.mxu0 %v256
    %979 = vmatpush1.msra.mxu0 %v255
    %980 = vmatprep.subr.mxu0 %v254
    %981 = vmatpush1.msra.mxu0 %v253
    %982 = vmatprep.subr.mxu0 %v252
    %983 = vmatpush1.msra.mxu0 %v251
    %984 = vmatprep.subr.mxu0 %v250
    %985 = vmatpush1.msra.mxu0 %v249
    %986 = vmatprep.subr.mxu0 %v248
    %987 = vmatpush1.msra.mxu0 %v247
    %988 = vmatprep.subr.mxu0 %v246
    %989 = vmatpush1.msra.mxu0 %v245
    %990 = vmatprep.subr.mxu0 0.0
    %991 = vmatpush2.msra.mxu0 0.0
    %992 = vmatprep.subr.mxu0 0.0
    %993 = vmatpush2.msra.mxu0 0.0
    %994 = vmatprep.subr.mxu0 0.0
    %995 = vmatpush2.msra.mxu0 0.0
    %996 = vmatprep.subr.mxu0 0.0
    %997 = vmatpush2.msra.mxu0 0.0
    %998 = vmatprep.subr.mxu0 0.0
    %999 = vmatpush2.msra.mxu0 0.0
    %1000 = vmatprep.subr.mxu0 0.0
    %1001 = vmatpush2.msra.mxu0 0.0
    %1002 = vmatprep.subr.mxu0 0.0
    %1003 = vmatpush2.msra.mxu0 0.0
    %1004 = vmatprep.subr.mxu0 0.0
    %1005 = vmatpush2.msra.mxu0 0.0
    %1006 = vmatprep.subr.mxu0 0.0
    %1007 = vmatpush2.msra.mxu0 0.0
    %1008 = vmatprep.subr.mxu0 0.0
    %1009 = vmatpush2.msra.mxu0 0.0
    %1010 = vmatprep.subr.mxu0 0.0
    %1011 = vmatpush2.msra.mxu0 0.0
    %1012 = vmatprep.subr.mxu0 0.0
    %1013 = vmatpush2.msra.mxu0 0.0
    %1014 = vmatprep.subr.mxu0 0.0
    %1015 = vmatpush2.msra.mxu0 0.0
    %1016 = vmatprep.subr.mxu0 0.0
    %1017 = vmatpush2.msra.mxu0 0.0
    %1018 = vmatprep.subr.mxu0 0.0
    %1019 = vmatpush2.msra.mxu0 0.0
    %1020 = vmatprep.subr.mxu0 0.0
    %1021 = vmatpush2.msra.mxu0 0.0
    %1022 = vmatprep.mubr.f32.mxu0 0.0
    %1023 = vmatmul.mubr.f32.gmra.mxu0 %v956
    %v1024 = vpop.f32.mrf.mxu0
    %v1025 = vadd.f32 0.0, %v1024
    %v1026 = vpop.f32.mrf.mxu0
    %v1027 = vadd.f32 0.0, %v1026
    %1028 = vdwg.mxu0
    %v1029 = vadd.f32 %v241, %v1025
    %v1030 = vadd.f32 %v243, %v1027
    %v1031 = vtanh.pop %v1029
    %v1032 = vtanh.pop %v1030
    %v1033 = vmul.f32 %v1031, 0.5
    %v1034 = vmul.f32 %v1032, 0.5
    %v1035 = vadd.f32 %v1033, 0.5
    %v1036 = vadd.f32 %v1034, 0.5
    %v1037 = vmul.f32 %v1035, %v948
    %1039 = vrot.lane.b32.xlu0 %v1032, 64
    %v1040 = vpop.permute.xlu0 %1039
    %v1042 = vmul.f32 %v1035, %v1040
    %1044 = vrot.lane.b32.xlu0 %v1042, 64
    %v1045 = vpop.permute.xlu0 %1044
    %v1047 = vadd.f32 %v1037, %v1045
    %v1048 = vtanh.pop %v1047
    %1050 = vrot.lane.b32.xlu0 %v1048, 64
    %v1051 = vpop.permute.xlu0 %1050
    %v1053 = vmul.f32 %v1036, %v1051
    %v1054 = vld [vmem:[%s4] sm:$0xff]
    %v1055 = vld [vmem:[%s4 + $0x8] sm:$0xff]
    %v1056 = vld [vmem:[%s4 + $0x10] sm:$0xff]
    %v1057 = vld [vmem:[%s4 + $0x18] sm:$0xff]
    %v1058 = vld [vmem:[%s4 + $0x20] sm:$0xff]
    %v1059 = vld [vmem:[%s4 + $0x28] sm:$0xff]
    %v1060 = vld [vmem:[%s4 + $0x30] sm:$0xff]
    %v1061 = vld [vmem:[%s4 + $0x38] sm:$0xff]
    %v1062 = vld [vmem:[%s4 + $0x40] sm:$0xff]
    %v1063 = vld [vmem:[%s4 + $0x48] sm:$0xff]
    %v1064 = vld [vmem:[%s4 + $0x50] sm:$0xff]
    %v1065 = vld [vmem:[%s4 + $0x58] sm:$0xff]
    %v1066 = vld [vmem:[%s4 + $0x60] sm:$0xff]
    %v1067 = vld [vmem:[%s4 + $0x68] sm:$0xff]
    %v1068 = vld [vmem:[%s4 + $0x70] sm:$0xff]
    %v1069 = vld [vmem:[%s4 + $0x78] sm:$0xff]
    %v1070 = vld [vmem:[%s5] sm:$0xff]
    %v1071 = vld [vmem:[%s5 + $0x8] sm:$0xff]
    %v1072 = vld [vmem:[%s5 + $0x10] sm:$0xff]
    %v1073 = vld [vmem:[%s5 + $0x18] sm:$0xff]
    %v1074 = vld [vmem:[%s5 + $0x20] sm:$0xff]
    %v1075 = vld [vmem:[%s5 + $0x28] sm:$0xff]
    %v1076 = vld [vmem:[%s5 + $0x30] sm:$0xff]
    %v1077 = vld [vmem:[%s5 + $0x38] sm:$0xff]
    %v1078 = vld [vmem:[%s5 + $0x40] sm:$0xff]
    %v1079 = vld [vmem:[%s5 + $0x48] sm:$0xff]
    %v1080 = vld [vmem:[%s5 + $0x50] sm:$0xff]
    %v1081 = vld [vmem:[%s5 + $0x58] sm:$0xff]
    %v1082 = vld [vmem:[%s5 + $0x60] sm:$0xff]
    %v1083 = vld [vmem:[%s5 + $0x68] sm:$0xff]
    %v1084 = vld [vmem:[%s5 + $0x70] sm:$0xff]
    %v1085 = vld [vmem:[%s5 + $0x78] sm:$0xff]
    %v1087 = vsel %vm261, %v1053, 0
    %1089 = vmatprep.subr.mxu0 0.0
    %1090 = vmatpush1.msra.mxu0 0.0
    %1091 = vmatprep.subr.mxu0 0.0
    %1092 = vmatpush1.msra.mxu0 0.0
    %1093 = vmatprep.subr.mxu0 0.0
    %1094 = vmatpush1.msra.mxu0 0.0
    %1095 = vmatprep.subr.mxu0 0.0
    %1096 = vmatpush1.msra.mxu0 0.0
    %1097 = vmatprep.subr.mxu0 0.0
    %1098 = vmatpush1.msra.mxu0 0.0
    %1099 = vmatprep.subr.mxu0 0.0
    %1100 = vmatpush1.msra.mxu0 0.0
    %1101 = vmatprep.subr.mxu0 0.0
    %1102 = vmatpush1.msra.mxu0 0.0
    %1103 = vmatprep.subr.mxu0 0.0
    %1104 = vmatpush1.msra.mxu0 0.0
    %1105 = vmatprep.subr.mxu0 %v1085
    %1106 = vmatpush1.msra.mxu0 %v1084
    %1107 = vmatprep.subr.mxu0 %v1083
    %1108 = vmatpush1.msra.mxu0 %v1082
    %1109 = vmatprep.subr.mxu0 %v1081
    %1110 = vmatpush1.msra.mxu0 %v1080
    %1111 = vmatprep.subr.mxu0 %v1079
    %1112 = vmatpush1.msra.mxu0 %v1078
    %1113 = vmatprep.subr.mxu0 %v1077
    %1114 = vmatpush1.msra.mxu0 %v1076
    %1115 = vmatprep.subr.mxu0 %v1075
    %1116 = vmatpush1.msra.mxu0 %v1074
    %1117 = vmatprep.subr.mxu0 %v1073
    %1118 = vmatpush1.msra.mxu0 %v1072
    %1119 = vmatprep.subr.mxu0 %v1071
    %1120 = vmatpush1.msra.mxu0 %v1070
    %1121 = vmatprep.subr.mxu0 0.0
    %1122 = vmatpush2.msra.mxu0 0.0
    %1123 = vmatprep.subr.mxu0 0.0
    %1124 = vmatpush2.msra.mxu0 0.0
    %1125 = vmatprep.subr.mxu0 0.0
    %1126 = vmatpush2.msra.mxu0 0.0
    %1127 = vmatprep.subr.mxu0 0.0
    %1128 = vmatpush2.msra.mxu0 0.0
    %1129 = vmatprep.subr.mxu0 0.0
    %1130 = vmatpush2.msra.mxu0 0.0
    %1131 = vmatprep.subr.mxu0 0.0
    %1132 = vmatpush2.msra.mxu0 0.0
    %1133 = vmatprep.subr.mxu0 0.0
    %1134 = vmatpush2.msra.mxu0 0.0
    %1135 = vmatprep.subr.mxu0 0.0
    %1136 = vmatpush2.msra.mxu0 0.0
    %1137 = vmatprep.subr.mxu0 0.0
    %1138 = vmatpush2.msra.mxu0 0.0
    %1139 = vmatprep.subr.mxu0 0.0
    %1140 = vmatpush2.msra.mxu0 0.0
    %1141 = vmatprep.subr.mxu0 0.0
    %1142 = vmatpush2.msra.mxu0 0.0
    %1143 = vmatprep.subr.mxu0 0.0
    %1144 = vmatpush2.msra.mxu0 0.0
    %1145 = vmatprep.subr.mxu0 0.0
    %1146 = vmatpush2.msra.mxu0 0.0
    %1147 = vmatprep.subr.mxu0 0.0
    %1148 = vmatpush2.msra.mxu0 0.0
    %1149 = vmatprep.subr.mxu0 0.0
    %1150 = vmatpush2.msra.mxu0 0.0
    %1151 = vmatprep.subr.mxu0 0.0
    %1152 = vmatpush2.msra.mxu0 0.0
    %1153 = vmatprep.mubr.f32.mxu0 0.0
    %1154 = vmatmul.mubr.f32.gmra.mxu0 %v1087
    %v1155 = vpop.f32.mrf.mxu0
    %v1156 = vadd.f32 0.0, %v1155
    %v1157 = vpop.f32.mrf.mxu0
    %v1158 = vadd.f32 0.0, %v1157
    %1159 = vmatprep.mubr.f32.mxu0 0.0
    %1160 = vmatmul.mubr.f32.gmra.mxu0 %v956
    %v1161 = vpop.f32.mrf.mxu0
    %v1162 = vadd.f32 0.0, %v1161
    %v1163 = vpop.f32.mrf.mxu0
    %v1164 = vadd.f32 0.0, %v1163
    %1165 = vmatprep.mubr.f32.mxu0 0.0
    %1166 = vmatmul.mubr.f32.gmra.mxu0 %v857
    %v1167 = vpop.f32.mrf.mxu0
    %v1168 = vadd.f32 0.0, %v1167
    %v1169 = vpop.f32.mrf.mxu0
    %v1170 = vadd.f32 0.0, %v1169
    %1171 = vmatprep.mubr.f32.mxu0 0.0
    %1172 = vmatmul.mubr.f32.gmra.mxu0 %v758
    %v1173 = vpop.f32.mrf.mxu0
    %v1174 = vadd.f32 0.0, %v1173
    %v1175 = vpop.f32.mrf.mxu0
    %v1176 = vadd.f32 0.0, %v1175
    %1177 = vmatprep.mubr.f32.mxu0 0.0
    %1178 = vmatmul.mubr.f32.gmra.mxu0 %v659
    %v1179 = vpop.f32.mrf.mxu0
    %v1180 = vadd.f32 0.0, %v1179
    %v1181 = vpop.f32.mrf.mxu0
    %v1182 = vadd.f32 0.0, %v1181
    %1183 = vmatprep.mubr.f32.mxu0 0.0
    %1184 = vmatmul.mubr.f32.gmra.mxu0 %v560
    %v1185 = vpop.f32.mrf.mxu0
    %v1186 = vadd.f32 0.0, %v1185
    %v1187 = vpop.f32.mrf.mxu0
    %v1188 = vadd.f32 0.0, %v1187
    %1189 = vmatprep.mubr.f32.mxu0 0.0
    %1190 = vmatmul.mubr.f32.gmra.mxu0 %v461
    %v1191 = vpop.f32.mrf.mxu0
    %v1192 = vadd.f32 0.0, %v1191
    %v1193 = vpop.f32.mrf.mxu0
    %v1194 = vadd.f32 0.0, %v1193
    %1195 = vmatprep.mubr.f32.mxu0 0.0
    %1196 = vmatmul.mubr.f32.gmra.mxu0 %v362
    %v1197 = vpop.f32.mrf.mxu0
    %v1198 = vadd.f32 0.0, %v1197
    %v1199 = vpop.f32.mrf.mxu0
    %v1200 = vadd.f32 0.0, %v1199
    %1201 = vdwg.mxu0
    %1202 = vmatprep.subr.mxu0 0.0
    %1203 = vmatpush1.msra.mxu0 0.0
    %1204 = vmatprep.subr.mxu0 0.0
    %1205 = vmatpush1.msra.mxu0 0.0
    %1206 = vmatprep.subr.mxu0 0.0
    %1207 = vmatpush1.msra.mxu0 0.0
    %1208 = vmatprep.subr.mxu0 0.0
    %1209 = vmatpush1.msra.mxu0 0.0
    %1210 = vmatprep.subr.mxu0 0.0
    %1211 = vmatpush1.msra.mxu0 0.0
    %1212 = vmatprep.subr.mxu0 0.0
    %1213 = vmatpush1.msra.mxu0 0.0
    %1214 = vmatprep.subr.mxu0 0.0
    %1215 = vmatpush1.msra.mxu0 0.0
    %1216 = vmatprep.subr.mxu0 0.0
    %1217 = vmatpush1.msra.mxu0 0.0
    %1218 = vmatprep.subr.mxu0 %v1069
    %1219 = vmatpush1.msra.mxu0 %v1068
    %1220 = vmatprep.subr.mxu0 %v1067
    %1221 = vmatpush1.msra.mxu0 %v1066
    %1222 = vmatprep.subr.mxu0 %v1065
    %1223 = vmatpush1.msra.mxu0 %v1064
    %1224 = vmatprep.subr.mxu0 %v1063
    %1225 = vmatpush1.msra.mxu0 %v1062
    %1226 = vmatprep.subr.mxu0 %v1061
    %1227 = vmatpush1.msra.mxu0 %v1060
    %1228 = vmatprep.subr.mxu0 %v1059
    %1229 = vmatpush1.msra.mxu0 %v1058
    %1230 = vmatprep.subr.mxu0 %v1057
    %1231 = vmatpush1.msra.mxu0 %v1056
    %1232 = vmatprep.subr.mxu0 %v1055
    %1233 = vmatpush1.msra.mxu0 %v1054
    %1234 = vmatprep.subr.mxu0 0.0
    %1235 = vmatpush2.msra.mxu0 0.0
    %1236 = vmatprep.subr.mxu0 0.0
    %1237 = vmatpush2.msra.mxu0 0.0
    %1238 = vmatprep.subr.mxu0 0.0
    %1239 = vmatpush2.msra.mxu0 0.0
    %1240 = vmatprep.subr.mxu0 0.0
    %1241 = vmatpush2.msra.mxu0 0.0
    %1242 = vmatprep.subr.mxu0 0.0
    %1243 = vmatpush2.msra.mxu0 0.0
    %1244 = vmatprep.subr.mxu0 0.0
    %1245 = vmatpush2.msra.mxu0 0.0
    %1246 = vmatprep.subr.mxu0 0.0
    %1247 = vmatpush2.msra.mxu0 0.0
    %1248 = vmatprep.subr.mxu0 0.0
    %1249 = vmatpush2.msra.mxu0 0.0
    %1250 = vmatprep.subr.mxu0 0.0
    %1251 = vmatpush2.msra.mxu0 0.0
    %1252 = vmatprep.subr.mxu0 0.0
    %1253 = vmatpush2.msra.mxu0 0.0
    %1254 = vmatprep.subr.mxu0 0.0
    %1255 = vmatpush2.msra.mxu0 0.0
    %1256 = vmatprep.subr.mxu0 0.0
    %1257 = vmatpush2.msra.mxu0 0.0
    %1258 = vmatprep.subr.mxu0 0.0
    %1259 = vmatpush2.msra.mxu0 0.0
    %1260 = vmatprep.subr.mxu0 0.0
    %1261 = vmatpush2.msra.mxu0 0.0
    %1262 = vmatprep.subr.mxu0 0.0
    %1263 = vmatpush2.msra.mxu0 0.0
    %1264 = vmatprep.subr.mxu0 0.0
    %1265 = vmatpush2.msra.mxu0 0.0
    %1266 = vmatprep.mubr.f32.mxu0 0.0
    %1267 = vmatmul.mubr.f32.gmra.mxu0 %v362
    %v1268 = vpop.f32.mrf.mxu0
    %v1269 = vadd.f32 %v1156, %v1268
    %v1270 = vpop.f32.mrf.mxu0
    %v1271 = vadd.f32 %v1158, %v1270
    %1272 = vmatprep.mubr.f32.mxu0 0.0
    %1273 = vmatmul.mubr.f32.gmra.mxu0 %v461
    %v1274 = vpop.f32.mrf.mxu0
    %v1275 = vadd.f32 %v1162, %v1274
    %v1276 = vpop.f32.mrf.mxu0
    %v1277 = vadd.f32 %v1164, %v1276
    %1278 = vmatprep.mubr.f32.mxu0 0.0
    %1279 = vmatmul.mubr.f32.gmra.mxu0 %v560
    %v1280 = vpop.f32.mrf.mxu0
    %v1281 = vadd.f32 %v1168, %v1280
    %v1282 = vpop.f32.mrf.mxu0
    %v1283 = vadd.f32 %v1170, %v1282
    %1284 = vmatprep.mubr.f32.mxu0 0.0
    %1285 = vmatmul.mubr.f32.gmra.mxu0 %v659
    %v1286 = vpop.f32.mrf.mxu0
    %v1287 = vadd.f32 %v1174, %v1286
    %v1288 = vpop.f32.mrf.mxu0
    %v1289 = vadd.f32 %v1176, %v1288
    %1290 = vmatprep.mubr.f32.mxu0 0.0
    %1291 = vmatmul.mubr.f32.gmra.mxu0 %v758
    %v1292 = vpop.f32.mrf.mxu0
    %v1293 = vadd.f32 %v1180, %v1292
    %v1294 = vpop.f32.mrf.mxu0
    %v1295 = vadd.f32 %v1182, %v1294
    %1296 = vmatprep.mubr.f32.mxu0 0.0
    %1297 = vmatmul.mubr.f32.gmra.mxu0 %v857
    %v1298 = vpop.f32.mrf.mxu0
    %v1299 = vadd.f32 %v1186, %v1298
    %v1300 = vpop.f32.mrf.mxu0
    %v1301 = vadd.f32 %v1188, %v1300
    %1302 = vmatprep.mubr.f32.mxu0 0.0
    %1303 = vmatmul.mubr.f32.gmra.mxu0 %v956
    %v1304 = vpop.f32.mrf.mxu0
    %v1305 = vadd.f32 %v1192, %v1304
    %v1306 = vpop.f32.mrf.mxu0
    %v1307 = vadd.f32 %v1194, %v1306
    %1308 = vmatprep.mubr.f32.mxu0 0.0
    %1309 = vmatmul.mubr.f32.gmra.mxu0 %v1087
    %v1310 = vpop.f32.mrf.mxu0
    %v1311 = vadd.f32 %v1198, %v1310
    %v1312 = vpop.f32.mrf.mxu0
    %v1313 = vadd.f32 %v1200, %v1312
    %1314 = vdwg.mxu0
    %v1315 = vld [vmem:[%s6] sm:$0x3]
    %v1317 = vlaneseq
    %v1318 = vshrl.u32 %v1317, 7
    %v1319 = vsub.s32 0, %v1318
    %v1320 = vrot.slane %v1315, %v1319
    %v1321 = vlaneseq
    %v1322 = vshrl.u32 %v1321, 7
    %v1323 = vsub.s32 1, %v1322
    %v1324 = vrot.slane %v1315, %v1323
    %v1327 = vadd.f32 %v1269, %v1320
    %v1328 = vadd.f32 %v1271, %v1324
    %v1329 = vadd.f32 %v1275, %v1320
    %v1330 = vadd.f32 %v1277, %v1324
    %v1331 = vadd.f32 %v1281, %v1320
    %v1332 = vadd.f32 %v1283, %v1324
    %v1333 = vadd.f32 %v1287, %v1320
    %v1334 = vadd.f32 %v1289, %v1324
    %v1335 = vadd.f32 %v1293, %v1320
    %v1336 = vadd.f32 %v1295, %v1324
    %v1337 = vadd.f32 %v1299, %v1320
    %v1338 = vadd.f32 %v1301, %v1324
    %v1339 = vadd.f32 %v1305, %v1320
    %v1340 = vadd.f32 %v1307, %v1324
    %v1341 = vadd.f32 %v1311, %v1320
    %v1342 = vadd.f32 %v1313, %v1324
    %v1343 = vld [vmem:[%s7] sm:$0xff]
    %v1344 = vld [vmem:[%s7 + $0x8] sm:$0xff]
    %v1345 = vld [vmem:[%s7 + $0x10] sm:$0xff]
    %v1346 = vld [vmem:[%s7 + $0x18] sm:$0xff]
    %v1347 = vld [vmem:[%s7 + $0x20] sm:$0xff]
    %v1348 = vld [vmem:[%s7 + $0x28] sm:$0xff]
    %v1349 = vld [vmem:[%s7 + $0x30] sm:$0xff]
    %v1350 = vld [vmem:[%s7 + $0x38] sm:$0xff]
    %v1351 = vld [vmem:[%s7 + $0x40] sm:$0xff]
    %v1352 = vld [vmem:[%s7 + $0x48] sm:$0xff]
    %v1353 = vld [vmem:[%s7 + $0x50] sm:$0xff]
    %v1354 = vld [vmem:[%s7 + $0x58] sm:$0xff]
    %v1355 = vld [vmem:[%s7 + $0x60] sm:$0xff]
    %v1356 = vld [vmem:[%s7 + $0x68] sm:$0xff]
    %v1357 = vld [vmem:[%s7 + $0x70] sm:$0xff]
    %v1358 = vld [vmem:[%s7 + $0x78] sm:$0xff]
    %1359 = vmatprep.subr.mxu0 0.0
    %1360 = vmatpush1.msra.mxu0 0.0
    %1361 = vmatprep.subr.mxu0 0.0
    %1362 = vmatpush1.msra.mxu0 0.0
    %1363 = vmatprep.subr.mxu0 0.0
    %1364 = vmatpush1.msra.mxu0 0.0
    %1365 = vmatprep.subr.mxu0 0.0
    %1366 = vmatpush1.msra.mxu0 0.0
    %1367 = vmatprep.subr.mxu0 0.0
    %1368 = vmatpush1.msra.mxu0 0.0
    %1369 = vmatprep.subr.mxu0 0.0
    %1370 = vmatpush1.msra.mxu0 0.0
    %1371 = vmatprep.subr.mxu0 0.0
    %1372 = vmatpush1.msra.mxu0 0.0
    %1373 = vmatprep.subr.mxu0 0.0
    %1374 = vmatpush1.msra.mxu0 0.0
    %1375 = vmatprep.subr.mxu0 %v1358
    %1376 = vmatpush1.msra.mxu0 %v1357
    %1377 = vmatprep.subr.mxu0 %v1356
    %1378 = vmatpush1.msra.mxu0 %v1355
    %1379 = vmatprep.subr.mxu0 %v1354
    %1380 = vmatpush1.msra.mxu0 %v1353
    %1381 = vmatprep.subr.mxu0 %v1352
    %1382 = vmatpush1.msra.mxu0 %v1351
    %1383 = vmatprep.subr.mxu0 %v1350
    %1384 = vmatpush1.msra.mxu0 %v1349
    %1385 = vmatprep.subr.mxu0 %v1348
    %1386 = vmatpush1.msra.mxu0 %v1347
    %1387 = vmatprep.subr.mxu0 %v1346
    %1388 = vmatpush1.msra.mxu0 %v1345
    %1389 = vmatprep.subr.mxu0 %v1344
    %1390 = vmatpush1.msra.mxu0 %v1343
    %1391 = vmatprep.subr.mxu0 0.0
    %1392 = vmatpush2.msra.mxu0 0.0
    %1393 = vmatprep.subr.mxu0 0.0
    %1394 = vmatpush2.msra.mxu0 0.0
    %1395 = vmatprep.subr.mxu0 0.0
    %1396 = vmatpush2.msra.mxu0 0.0
    %1397 = vmatprep.subr.mxu0 0.0
    %1398 = vmatpush2.msra.mxu0 0.0
    %1399 = vmatprep.subr.mxu0 0.0
    %1400 = vmatpush2.msra.mxu0 0.0
    %1401 = vmatprep.subr.mxu0 0.0
    %1402 = vmatpush2.msra.mxu0 0.0
    %1403 = vmatprep.subr.mxu0 0.0
    %1404 = vmatpush2.msra.mxu0 0.0
    %1405 = vmatprep.subr.mxu0 0.0
    %1406 = vmatpush2.msra.mxu0 0.0
    %1407 = vmatprep.subr.mxu0 0.0
    %1408 = vmatpush2.msra.mxu0 0.0
    %1409 = vmatprep.subr.mxu0 0.0
    %1410 = vmatpush2.msra.mxu0 0.0
    %1411 = vmatprep.subr.mxu0 0.0
    %1412 = vmatpush2.msra.mxu0 0.0
    %1413 = vmatprep.subr.mxu0 0.0
    %1414 = vmatpush2.msra.mxu0 0.0
    %1415 = vmatprep.subr.mxu0 0.0
    %1416 = vmatpush2.msra.mxu0 0.0
    %1417 = vmatprep.subr.mxu0 0.0
    %1418 = vmatpush2.msra.mxu0 0.0
    %1419 = vmatprep.subr.mxu0 0.0
    %1420 = vmatpush2.msra.mxu0 0.0
    %1421 = vmatprep.subr.mxu0 0.0
    %1422 = vmatpush2.msra.mxu0 0.0
    %1423 = vmatprep.mubr.f32.mxu0 0.0
    %1424 = vmatmul.mubr.f32.gmra.mxu0 %v263
    %v1425 = vpop.f32.mrf.mxu0
    %v1426 = vadd.f32 0.0, %v1425
    %v1427 = vpop.f32.mrf.mxu0
    %v1428 = vadd.f32 0.0, %v1427
    %1429 = vdwg.mxu0
    %v1430 = vadd.f32 %v1327, %v1426
    %v1431 = vadd.f32 %v1328, %v1428
    %v1432 = vtanh.pop %v1430
    %v1433 = vtanh.pop %v1431
    %v1434 = vmul.f32 %v1432, 0.5
    %v1435 = vmul.f32 %v1433, 0.5
    %v1436 = vadd.f32 %v1434, 0.5
    %v1437 = vadd.f32 %v1435, 0.5
    %v1438 = vmul.f32 %v1436, 0.0
    %1440 = vrot.lane.b32.xlu0 %v1433, 64
    %v1441 = vpop.permute.xlu0 %1440
    %v1443 = vmul.f32 %v1436, %v1441
    %1445 = vrot.lane.b32.xlu0 %v1443, 64
    %v1446 = vpop.permute.xlu0 %1445
    %v1448 = vadd.f32 %v1438, %v1446
    %v1449 = vtanh.pop %v1448
    %1451 = vrot.lane.b32.xlu0 %v1449, 64
    %v1452 = vpop.permute.xlu0 %1451
    %v1454 = vmul.f32 %v1437, %v1452
    %v1456 = vsel %vm261, %v1454, 0
    %1458 = vmatprep.subr.mxu0 0.0
    %1459 = vmatpush1.msra.mxu0 0.0
    %1460 = vmatprep.subr.mxu0 0.0
    %1461 = vmatpush1.msra.mxu0 0.0
    %1462 = vmatprep.subr.mxu0 0.0
    %1463 = vmatpush1.msra.mxu0 0.0
    %1464 = vmatprep.subr.mxu0 0.0
    %1465 = vmatpush1.msra.mxu0 0.0
    %1466 = vmatprep.subr.mxu0 0.0
    %1467 = vmatpush1.msra.mxu0 0.0
    %1468 = vmatprep.subr.mxu0 0.0
    %1469 = vmatpush1.msra.mxu0 0.0
    %1470 = vmatprep.subr.mxu0 0.0
    %1471 = vmatpush1.msra.mxu0 0.0
    %1472 = vmatprep.subr.mxu0 0.0
    %1473 = vmatpush1.msra.mxu0 0.0
    %1474 = vmatprep.subr.mxu0 %v1358
    %1475 = vmatpush1.msra.mxu0 %v1357
    %1476 = vmatprep.subr.mxu0 %v1356
    %1477 = vmatpush1.msra.mxu0 %v1355
    %1478 = vmatprep.subr.mxu0 %v1354
    %1479 = vmatpush1.msra.mxu0 %v1353
    %1480 = vmatprep.subr.mxu0 %v1352
    %1481 = vmatpush1.msra.mxu0 %v1351
    %1482 = vmatprep.subr.mxu0 %v1350
    %1483 = vmatpush1.msra.mxu0 %v1349
    %1484 = vmatprep.subr.mxu0 %v1348
    %1485 = vmatpush1.msra.mxu0 %v1347
    %1486 = vmatprep.subr.mxu0 %v1346
    %1487 = vmatpush1.msra.mxu0 %v1345
    %1488 = vmatprep.subr.mxu0 %v1344
    %1489 = vmatpush1.msra.mxu0 %v1343
    %1490 = vmatprep.subr.mxu0 0.0
    %1491 = vmatpush2.msra.mxu0 0.0
    %1492 = vmatprep.subr.mxu0 0.0
    %1493 = vmatpush2.msra.mxu0 0.0
    %1494 = vmatprep.subr.mxu0 0.0
    %1495 = vmatpush2.msra.mxu0 0.0
    %1496 = vmatprep.subr.mxu0 0.0
    %1497 = vmatpush2.msra.mxu0 0.0
    %1498 = vmatprep.subr.mxu0 0.0
    %1499 = vmatpush2.msra.mxu0 0.0
    %1500 = vmatprep.subr.mxu0 0.0
    %1501 = vmatpush2.msra.mxu0 0.0
    %1502 = vmatprep.subr.mxu0 0.0
    %1503 = vmatpush2.msra.mxu0 0.0
    %1504 = vmatprep.subr.mxu0 0.0
    %1505 = vmatpush2.msra.mxu0 0.0
    %1506 = vmatprep.subr.mxu0 0.0
    %1507 = vmatpush2.msra.mxu0 0.0
    %1508 = vmatprep.subr.mxu0 0.0
    %1509 = vmatpush2.msra.mxu0 0.0
    %1510 = vmatprep.subr.mxu0 0.0
    %1511 = vmatpush2.msra.mxu0 0.0
    %1512 = vmatprep.subr.mxu0 0.0
    %1513 = vmatpush2.msra.mxu0 0.0
    %1514 = vmatprep.subr.mxu0 0.0
    %1515 = vmatpush2.msra.mxu0 0.0
    %1516 = vmatprep.subr.mxu0 0.0
    %1517 = vmatpush2.msra.mxu0 0.0
    %1518 = vmatprep.subr.mxu0 0.0
    %1519 = vmatpush2.msra.mxu0 0.0
    %1520 = vmatprep.subr.mxu0 0.0
    %1521 = vmatpush2.msra.mxu0 0.0
    %1522 = vmatprep.mubr.f32.mxu0 0.0
    %1523 = vmatmul.mubr.f32.gmra.mxu0 %v1456
    %v1524 = vpop.f32.mrf.mxu0
    %v1525 = vadd.f32 0.0, %v1524
    %v1526 = vpop.f32.mrf.mxu0
    %v1527 = vadd.f32 0.0, %v1526
    %1528 = vdwg.mxu0
    %v1529 = vadd.f32 %v1329, %v1525
    %v1530 = vadd.f32 %v1330, %v1527
    %v1531 = vtanh.pop %v1529
    %v1532 = vtanh.pop %v1530
    %v1533 = vmul.f32 %v1531, 0.5
    %v1534 = vmul.f32 %v1532, 0.5
    %v1535 = vadd.f32 %v1533, 0.5
    %v1536 = vadd.f32 %v1534, 0.5
    %v1537 = vmul.f32 %v1535, %v1448
    %1539 = vrot.lane.b32.xlu0 %v1532, 64
    %v1540 = vpop.permute.xlu0 %1539
    %v1542 = vmul.f32 %v1535, %v1540
    %1544 = vrot.lane.b32.xlu0 %v1542, 64
    %v1545 = vpop.permute.xlu0 %1544
    %v1547 = vadd.f32 %v1537, %v1545
    %v1548 = vtanh.pop %v1547
    %1550 = vrot.lane.b32.xlu0 %v1548, 64
    %v1551 = vpop.permute.xlu0 %1550
    %v1553 = vmul.f32 %v1536, %v1551
    %v1555 = vsel %vm261, %v1553, 0
    %1557 = vmatprep.subr.mxu0 0.0
    %1558 = vmatpush1.msra.mxu0 0.0
    %1559 = vmatprep.subr.mxu0 0.0
    %1560 = vmatpush1.msra.mxu0 0.0
    %1561 = vmatprep.subr.mxu0 0.0
    %1562 = vmatpush1.msra.mxu0 0.0
    %1563 = vmatprep.subr.mxu0 0.0
    %1564 = vmatpush1.msra.mxu0 0.0
    %1565 = vmatprep.subr.mxu0 0.0
    %1566 = vmatpush1.msra.mxu0 0.0
    %1567 = vmatprep.subr.mxu0 0.0
    %1568 = vmatpush1.msra.mxu0 0.0
    %1569 = vmatprep.subr.mxu0 0.0
    %1570 = vmatpush1.msra.mxu0 0.0
    %1571 = vmatprep.subr.mxu0 0.0
    %1572 = vmatpush1.msra.mxu0 0.0
    %1573 = vmatprep.subr.mxu0 %v1358
    %1574 = vmatpush1.msra.mxu0 %v1357
    %1575 = vmatprep.subr.mxu0 %v1356
    %1576 = vmatpush1.msra.mxu0 %v1355
    %1577 = vmatprep.subr.mxu0 %v1354
    %1578 = vmatpush1.msra.mxu0 %v1353
    %1579 = vmatprep.subr.mxu0 %v1352
    %1580 = vmatpush1.msra.mxu0 %v1351
    %1581 = vmatprep.subr.mxu0 %v1350
    %1582 = vmatpush1.msra.mxu0 %v1349
    %1583 = vmatprep.subr.mxu0 %v1348
    %1584 = vmatpush1.msra.mxu0 %v1347
    %1585 = vmatprep.subr.mxu0 %v1346
    %1586 = vmatpush1.msra.mxu0 %v1345
    %1587 = vmatprep.subr.mxu0 %v1344
    %1588 = vmatpush1.msra.mxu0 %v1343
    %1589 = vmatprep.subr.mxu0 0.0
    %1590 = vmatpush2.msra.mxu0 0.0
    %1591 = vmatprep.subr.mxu0 0.0
    %1592 = vmatpush2.msra.mxu0 0.0
    %1593 = vmatprep.subr.mxu0 0.0
    %1594 = vmatpush2.msra.mxu0 0.0
    %1595 = vmatprep.subr.mxu0 0.0
    %1596 = vmatpush2.msra.mxu0 0.0
    %1597 = vmatprep.subr.mxu0 0.0
    %1598 = vmatpush2.msra.mxu0 0.0
    %1599 = vmatprep.subr.mxu0 0.0
    %1600 = vmatpush2.msra.mxu0 0.0
    %1601 = vmatprep.subr.mxu0 0.0
    %1602 = vmatpush2.msra.mxu0 0.0
    %1603 = vmatprep.subr.mxu0 0.0
    %1604 = vmatpush2.msra.mxu0 0.0
    %1605 = vmatprep.subr.mxu0 0.0
    %1606 = vmatpush2.msra.mxu0 0.0
    %1607 = vmatprep.subr.mxu0 0.0
    %1608 = vmatpush2.msra.mxu0 0.0
    %1609 = vmatprep.subr.mxu0 0.0
    %1610 = vmatpush2.msra.mxu0 0.0
    %1611 = vmatprep.subr.mxu0 0.0
    %1612 = vmatpush2.msra.mxu0 0.0
    %1613 = vmatprep.subr.mxu0 0.0
    %1614 = vmatpush2.msra.mxu0 0.0
    %1615 = vmatprep.subr.mxu0 0.0
    %1616 = vmatpush2.msra.mxu0 0.0
    %1617 = vmatprep.subr.mxu0 0.0
    %1618 = vmatpush2.msra.mxu0 0.0
    %1619 = vmatprep.subr.mxu0 0.0
    %1620 = vmatpush2.msra.mxu0 0.0
    %1621 = vmatprep.mubr.f32.mxu0 0.0
    %1622 = vmatmul.mubr.f32.gmra.mxu0 %v1555
    %v1623 = vpop.f32.mrf.mxu0
    %v1624 = vadd.f32 0.0, %v1623
    %v1625 = vpop.f32.mrf.mxu0
    %v1626 = vadd.f32 0.0, %v1625
    %1627 = vdwg.mxu0
    %v1628 = vadd.f32 %v1331, %v1624
    %v1629 = vadd.f32 %v1332, %v1626
    %v1630 = vtanh.pop %v1628
    %v1631 = vtanh.pop %v1629
    %v1632 = vmul.f32 %v1630, 0.5
    %v1633 = vmul.f32 %v1631, 0.5
    %v1634 = vadd.f32 %v1632, 0.5
    %v1635 = vadd.f32 %v1633, 0.5
    %v1636 = vmul.f32 %v1634, %v1547
    %1638 = vrot.lane.b32.xlu0 %v1631, 64
    %v1639 = vpop.permute.xlu0 %1638
    %v1641 = vmul.f32 %v1634, %v1639
    %1643 = vrot.lane.b32.xlu0 %v1641, 64
    %v1644 = vpop.permute.xlu0 %1643
    %v1646 = vadd.f32 %v1636, %v1644
    %v1647 = vtanh.pop %v1646
    %1649 = vrot.lane.b32.xlu0 %v1647, 64
    %v1650 = vpop.permute.xlu0 %1649
    %v1652 = vmul.f32 %v1635, %v1650
    %v1654 = vsel %vm261, %v1652, 0
    %1656 = vmatprep.subr.mxu0 0.0
    %1657 = vmatpush1.msra.mxu0 0.0
    %1658 = vmatprep.subr.mxu0 0.0
    %1659 = vmatpush1.msra.mxu0 0.0
    %1660 = vmatprep.subr.mxu0 0.0
    %1661 = vmatpush1.msra.mxu0 0.0
    %1662 = vmatprep.subr.mxu0 0.0
    %1663 = vmatpush1.msra.mxu0 0.0
    %1664 = vmatprep.subr.mxu0 0.0
    %1665 = vmatpush1.msra.mxu0 0.0
    %1666 = vmatprep.subr.mxu0 0.0
    %1667 = vmatpush1.msra.mxu0 0.0
    %1668 = vmatprep.subr.mxu0 0.0
    %1669 = vmatpush1.msra.mxu0 0.0
    %1670 = vmatprep.subr.mxu0 0.0
    %1671 = vmatpush1.msra.mxu0 0.0
    %1672 = vmatprep.subr.mxu0 %v1358
    %1673 = vmatpush1.msra.mxu0 %v1357
    %1674 = vmatprep.subr.mxu0 %v1356
    %1675 = vmatpush1.msra.mxu0 %v1355
    %1676 = vmatprep.subr.mxu0 %v1354
    %1677 = vmatpush1.msra.mxu0 %v1353
    %1678 = vmatprep.subr.mxu0 %v1352
    %1679 = vmatpush1.msra.mxu0 %v1351
    %1680 = vmatprep.subr.mxu0 %v1350
    %1681 = vmatpush1.msra.mxu0 %v1349
    %1682 = vmatprep.subr.mxu0 %v1348
    %1683 = vmatpush1.msra.mxu0 %v1347
    %1684 = vmatprep.subr.mxu0 %v1346
    %1685 = vmatpush1.msra.mxu0 %v1345
    %1686 = vmatprep.subr.mxu0 %v1344
    %1687 = vmatpush1.msra.mxu0 %v1343
    %1688 = vmatprep.subr.mxu0 0.0
    %1689 = vmatpush2.msra.mxu0 0.0
    %1690 = vmatprep.subr.mxu0 0.0
    %1691 = vmatpush2.msra.mxu0 0.0
    %1692 = vmatprep.subr.mxu0 0.0
    %1693 = vmatpush2.msra.mxu0 0.0
    %1694 = vmatprep.subr.mxu0 0.0
    %1695 = vmatpush2.msra.mxu0 0.0
    %1696 = vmatprep.subr.mxu0 0.0
    %1697 = vmatpush2.msra.mxu0 0.0
    %1698 = vmatprep.subr.mxu0 0.0
    %1699 = vmatpush2.msra.mxu0 0.0
    %1700 = vmatprep.subr.mxu0 0.0
    %1701 = vmatpush2.msra.mxu0 0.0
    %1702 = vmatprep.subr.mxu0 0.0
    %1703 = vmatpush2.msra.mxu0 0.0
    %1704 = vmatprep.subr.mxu0 0.0
    %1705 = vmatpush2.msra.mxu0 0.0
    %1706 = vmatprep.subr.mxu0 0.0
    %1707 = vmatpush2.msra.mxu0 0.0
    %1708 = vmatprep.subr.mxu0 0.0
    %1709 = vmatpush2.msra.mxu0 0.0
    %1710 = vmatprep.subr.mxu0 0.0
    %1711 = vmatpush2.msra.mxu0 0.0
    %1712 = vmatprep.subr.mxu0 0.0
    %1713 = vmatpush2.msra.mxu0 0.0
    %1714 = vmatprep.subr.mxu0 0.0
    %1715 = vmatpush2.msra.mxu0 0.0
    %1716 = vmatprep.subr.mxu0 0.0
    %1717 = vmatpush2.msra.mxu0 0.0
    %1718 = vmatprep.subr.mxu0 0.0
    %1719 = vmatpush2.msra.mxu0 0.0
    %1720 = vmatprep.mubr.f32.mxu0 0.0
    %1721 = vmatmul.mubr.f32.gmra.mxu0 %v1654
    %v1722 = vpop.f32.mrf.mxu0
    %v1723 = vadd.f32 0.0, %v1722
    %v1724 = vpop.f32.mrf.mxu0
    %v1725 = vadd.f32 0.0, %v1724
    %1726 = vdwg.mxu0
    %v1727 = vadd.f32 %v1333, %v1723
    %v1728 = vadd.f32 %v1334, %v1725
    %v1729 = vtanh.pop %v1727
    %v1730 = vtanh.pop %v1728
    %v1731 = vmul.f32 %v1729, 0.5
    %v1732 = vmul.f32 %v1730, 0.5
    %v1733 = vadd.f32 %v1731, 0.5
    %v1734 = vadd.f32 %v1732, 0.5
    %v1735 = vmul.f32 %v1733, %v1646
    %1737 = vrot.lane.b32.xlu0 %v1730, 64
    %v1738 = vpop.permute.xlu0 %1737
    %v1740 = vmul.f32 %v1733, %v1738
    %1742 = vrot.lane.b32.xlu0 %v1740, 64
    %v1743 = vpop.permute.xlu0 %1742
    %v1745 = vadd.f32 %v1735, %v1743
    %v1746 = vtanh.pop %v1745
    %1748 = vrot.lane.b32.xlu0 %v1746, 64
    %v1749 = vpop.permute.xlu0 %1748
    %v1751 = vmul.f32 %v1734, %v1749
    %v1753 = vsel %vm261, %v1751, 0
    %1755 = vmatprep.subr.mxu0 0.0
    %1756 = vmatpush1.msra.mxu0 0.0
    %1757 = vmatprep.subr.mxu0 0.0
    %1758 = vmatpush1.msra.mxu0 0.0
    %1759 = vmatprep.subr.mxu0 0.0
    %1760 = vmatpush1.msra.mxu0 0.0
    %1761 = vmatprep.subr.mxu0 0.0
    %1762 = vmatpush1.msra.mxu0 0.0
    %1763 = vmatprep.subr.mxu0 0.0
    %1764 = vmatpush1.msra.mxu0 0.0
    %1765 = vmatprep.subr.mxu0 0.0
    %1766 = vmatpush1.msra.mxu0 0.0
    %1767 = vmatprep.subr.mxu0 0.0
    %1768 = vmatpush1.msra.mxu0 0.0
    %1769 = vmatprep.subr.mxu0 0.0
    %1770 = vmatpush1.msra.mxu0 0.0
    %1771 = vmatprep.subr.mxu0 %v1358
    %1772 = vmatpush1.msra.mxu0 %v1357
    %1773 = vmatprep.subr.mxu0 %v1356
    %1774 = vmatpush1.msra.mxu0 %v1355
    %1775 = vmatprep.subr.mxu0 %v1354
    %1776 = vmatpush1.msra.mxu0 %v1353
    %1777 = vmatprep.subr.mxu0 %v1352
    %1778 = vmatpush1.msra.mxu0 %v1351
    %1779 = vmatprep.subr.mxu0 %v1350
    %1780 = vmatpush1.msra.mxu0 %v1349
    %1781 = vmatprep.subr.mxu0 %v1348
    %1782 = vmatpush1.msra.mxu0 %v1347
    %1783 = vmatprep.subr.mxu0 %v1346
    %1784 = vmatpush1.msra.mxu0 %v1345
    %1785 = vmatprep.subr.mxu0 %v1344
    %1786 = vmatpush1.msra.mxu0 %v1343
    %1787 = vmatprep.subr.mxu0 0.0
    %1788 = vmatpush2.msra.mxu0 0.0
    %1789 = vmatprep.subr.mxu0 0.0
    %1790 = vmatpush2.msra.mxu0 0.0
    %1791 = vmatprep.subr.mxu0 0.0
    %1792 = vmatpush2.msra.mxu0 0.0
    %1793 = vmatprep.subr.mxu0 0.0
    %1794 = vmatpush2.msra.mxu0 0.0
    %1795 = vmatprep.subr.mxu0 0.0
    %1796 = vmatpush2.msra.mxu0 0.0
    %1797 = vmatprep.subr.mxu0 0.0
    %1798 = vmatpush2.msra.mxu0 0.0
    %1799 = vmatprep.subr.mxu0 0.0
    %1800 = vmatpush2.msra.mxu0 0.0
    %1801 = vmatprep.subr.mxu0 0.0
    %1802 = vmatpush2.msra.mxu0 0.0
    %1803 = vmatprep.subr.mxu0 0.0
    %1804 = vmatpush2.msra.mxu0 0.0
    %1805 = vmatprep.subr.mxu0 0.0
    %1806 = vmatpush2.msra.mxu0 0.0
    %1807 = vmatprep.subr.mxu0 0.0
    %1808 = vmatpush2.msra.mxu0 0.0
    %1809 = vmatprep.subr.mxu0 0.0
    %1810 = vmatpush2.msra.mxu0 0.0
    %1811 = vmatprep.subr.mxu0 0.0
    %1812 = vmatpush2.msra.mxu0 0.0
    %1813 = vmatprep.subr.mxu0 0.0
    %1814 = vmatpush2.msra.mxu0 0.0
    %1815 = vmatprep.subr.mxu0 0.0
    %1816 = vmatpush2.msra.mxu0 0.0
    %1817 = vmatprep.subr.mxu0 0.0
    %1818 = vmatpush2.msra.mxu0 0.0
    %1819 = vmatprep.mubr.f32.mxu0 0.0
    %1820 = vmatmul.mubr.f32.gmra.mxu0 %v1753
    %v1821 = vpop.f32.mrf.mxu0
    %v1822 = vadd.f32 0.0, %v1821
    %v1823 = vpop.f32.mrf.mxu0
    %v1824 = vadd.f32 0.0, %v1823
    %1825 = vdwg.mxu0
    %v1826 = vadd.f32 %v1335, %v1822
    %v1827 = vadd.f32 %v1336, %v1824
    %v1828 = vtanh.pop %v1826
    %v1829 = vtanh.pop %v1827
    %v1830 = vmul.f32 %v1828, 0.5
    %v1831 = vmul.f32 %v1829, 0.5
    %v1832 = vadd.f32 %v1830, 0.5
    %v1833 = vadd.f32 %v1831, 0.5
    %v1834 = vmul.f32 %v1832, %v1745
    %1836 = vrot.lane.b32.xlu0 %v1829, 64
    %v1837 = vpop.permute.xlu0 %1836
    %v1839 = vmul.f32 %v1832, %v1837
    %1841 = vrot.lane.b32.xlu0 %v1839, 64
    %v1842 = vpop.permute.xlu0 %1841
    %v1844 = vadd.f32 %v1834, %v1842
    %v1845 = vtanh.pop %v1844
    %1847 = vrot.lane.b32.xlu0 %v1845, 64
    %v1848 = vpop.permute.xlu0 %1847
    %v1850 = vmul.f32 %v1833, %v1848
    %v1852 = vsel %vm261, %v1850, 0
    %1854 = vmatprep.subr.mxu0 0.0
    %1855 = vmatpush1.msra.mxu0 0.0
    %1856 = vmatprep.subr.mxu0 0.0
    %1857 = vmatpush1.msra.mxu0 0.0
    %1858 = vmatprep.subr.mxu0 0.0
    %1859 = vmatpush1.msra.mxu0 0.0
    %1860 = vmatprep.subr.mxu0 0.0
    %1861 = vmatpush1.msra.mxu0 0.0
    %1862 = vmatprep.subr.mxu0 0.0
    %1863 = vmatpush1.msra.mxu0 0.0
    %1864 = vmatprep.subr.mxu0 0.0
    %1865 = vmatpush1.msra.mxu0 0.0
    %1866 = vmatprep.subr.mxu0 0.0
    %1867 = vmatpush1.msra.mxu0 0.0
    %1868 = vmatprep.subr.mxu0 0.0
    %1869 = vmatpush1.msra.mxu0 0.0
    %1870 = vmatprep.subr.mxu0 %v1358
    %1871 = vmatpush1.msra.mxu0 %v1357
    %1872 = vmatprep.subr.mxu0 %v1356
    %1873 = vmatpush1.msra.mxu0 %v1355
    %1874 = vmatprep.subr.mxu0 %v1354
    %1875 = vmatpush1.msra.mxu0 %v1353
    %1876 = vmatprep.subr.mxu0 %v1352
    %1877 = vmatpush1.msra.mxu0 %v1351
    %1878 = vmatprep.subr.mxu0 %v1350
    %1879 = vmatpush1.msra.mxu0 %v1349
    %1880 = vmatprep.subr.mxu0 %v1348
    %1881 = vmatpush1.msra.mxu0 %v1347
    %1882 = vmatprep.subr.mxu0 %v1346
    %1883 = vmatpush1.msra.mxu0 %v1345
    %1884 = vmatprep.subr.mxu0 %v1344
    %1885 = vmatpush1.msra.mxu0 %v1343
    %1886 = vmatprep.subr.mxu0 0.0
    %1887 = vmatpush2.msra.mxu0 0.0
    %1888 = vmatprep.subr.mxu0 0.0
    %1889 = vmatpush2.msra.mxu0 0.0
    %1890 = vmatprep.subr.mxu0 0.0
    %1891 = vmatpush2.msra.mxu0 0.0
    %1892 = vmatprep.subr.mxu0 0.0
    %1893 = vmatpush2.msra.mxu0 0.0
    %1894 = vmatprep.subr.mxu0 0.0
    %1895 = vmatpush2.msra.mxu0 0.0
    %1896 = vmatprep.subr.mxu0 0.0
    %1897 = vmatpush2.msra.mxu0 0.0
    %1898 = vmatprep.subr.mxu0 0.0
    %1899 = vmatpush2.msra.mxu0 0.0
    %1900 = vmatprep.subr.mxu0 0.0
    %1901 = vmatpush2.msra.mxu0 0.0
    %1902 = vmatprep.subr.mxu0 0.0
    %1903 = vmatpush2.msra.mxu0 0.0
    %1904 = vmatprep.subr.mxu0 0.0
    %1905 = vmatpush2.msra.mxu0 0.0
    %1906 = vmatprep.subr.mxu0 0.0
    %1907 = vmatpush2.msra.mxu0 0.0
    %1908 = vmatprep.subr.mxu0 0.0
    %1909 = vmatpush2.msra.mxu0 0.0
    %1910 = vmatprep.subr.mxu0 0.0
    %1911 = vmatpush2.msra.mxu0 0.0
    %1912 = vmatprep.subr.mxu0 0.0
    %1913 = vmatpush2.msra.mxu0 0.0
    %1914 = vmatprep.subr.mxu0 0.0
    %1915 = vmatpush2.msra.mxu0 0.0
    %1916 = vmatprep.subr.mxu0 0.0
    %1917 = vmatpush2.msra.mxu0 0.0
    %1918 = vmatprep.mubr.f32.mxu0 0.0
    %1919 = vmatmul.mubr.f32.gmra.mxu0 %v1852
    %v1920 = vpop.f32.mrf.mxu0
    %v1921 = vadd.f32 0.0, %v1920
    %v1922 = vpop.f32.mrf.mxu0
    %v1923 = vadd.f32 0.0, %v1922
    %1924 = vdwg.mxu0
    %v1925 = vadd.f32 %v1337, %v1921
    %v1926 = vadd.f32 %v1338, %v1923
    %v1927 = vtanh.pop %v1925
    %v1928 = vtanh.pop %v1926
    %v1929 = vmul.f32 %v1927, 0.5
    %v1930 = vmul.f32 %v1928, 0.5
    %v1931 = vadd.f32 %v1929, 0.5
    %v1932 = vadd.f32 %v1930, 0.5
    %v1933 = vmul.f32 %v1931, %v1844
    %1935 = vrot.lane.b32.xlu0 %v1928, 64
    %v1936 = vpop.permute.xlu0 %1935
    %v1938 = vmul.f32 %v1931, %v1936
    %1940 = vrot.lane.b32.xlu0 %v1938, 64
    %v1941 = vpop.permute.xlu0 %1940
    %v1943 = vadd.f32 %v1933, %v1941
    %v1944 = vtanh.pop %v1943
    %1946 = vrot.lane.b32.xlu0 %v1944, 64
    %v1947 = vpop.permute.xlu0 %1946
    %v1949 = vmul.f32 %v1932, %v1947
    %v1951 = vsel %vm261, %v1949, 0
    %1953 = vmatprep.subr.mxu0 0.0
    %1954 = vmatpush1.msra.mxu0 0.0
    %1955 = vmatprep.subr.mxu0 0.0
    %1956 = vmatpush1.msra.mxu0 0.0
    %1957 = vmatprep.subr.mxu0 0.0
    %1958 = vmatpush1.msra.mxu0 0.0
    %1959 = vmatprep.subr.mxu0 0.0
    %1960 = vmatpush1.msra.mxu0 0.0
    %1961 = vmatprep.subr.mxu0 0.0
    %1962 = vmatpush1.msra.mxu0 0.0
    %1963 = vmatprep.subr.mxu0 0.0
    %1964 = vmatpush1.msra.mxu0 0.0
    %1965 = vmatprep.subr.mxu0 0.0
    %1966 = vmatpush1.msra.mxu0 0.0
    %1967 = vmatprep.subr.mxu0 0.0
    %1968 = vmatpush1.msra.mxu0 0.0
    %1969 = vmatprep.subr.mxu0 %v1358
    %1970 = vmatpush1.msra.mxu0 %v1357
    %1971 = vmatprep.subr.mxu0 %v1356
    %1972 = vmatpush1.msra.mxu0 %v1355
    %1973 = vmatprep.subr.mxu0 %v1354
    %1974 = vmatpush1.msra.mxu0 %v1353
    %1975 = vmatprep.subr.mxu0 %v1352
    %1976 = vmatpush1.msra.mxu0 %v1351
    %1977 = vmatprep.subr.mxu0 %v1350
    %1978 = vmatpush1.msra.mxu0 %v1349
    %1979 = vmatprep.subr.mxu0 %v1348
    %1980 = vmatpush1.msra.mxu0 %v1347
    %1981 = vmatprep.subr.mxu0 %v1346
    %1982 = vmatpush1.msra.mxu0 %v1345
    %1983 = vmatprep.subr.mxu0 %v1344
    %1984 = vmatpush1.msra.mxu0 %v1343
    %1985 = vmatprep.subr.mxu0 0.0
    %1986 = vmatpush2.msra.mxu0 0.0
    %1987 = vmatprep.subr.mxu0 0.0
    %1988 = vmatpush2.msra.mxu0 0.0
    %1989 = vmatprep.subr.mxu0 0.0
    %1990 = vmatpush2.msra.mxu0 0.0
    %1991 = vmatprep.subr.mxu0 0.0
    %1992 = vmatpush2.msra.mxu0 0.0
    %1993 = vmatprep.subr.mxu0 0.0
    %1994 = vmatpush2.msra.mxu0 0.0
    %1995 = vmatprep.subr.mxu0 0.0
    %1996 = vmatpush2.msra.mxu0 0.0
    %1997 = vmatprep.subr.mxu0 0.0
    %1998 = vmatpush2.msra.mxu0 0.0
    %1999 = vmatprep.subr.mxu0 0.0
    %2000 = vmatpush2.msra.mxu0 0.0
    %2001 = vmatprep.subr.mxu0 0.0
    %2002 = vmatpush2.msra.mxu0 0.0
    %2003 = vmatprep.subr.mxu0 0.0
    %2004 = vmatpush2.msra.mxu0 0.0
    %2005 = vmatprep.subr.mxu0 0.0
    %2006 = vmatpush2.msra.mxu0 0.0
    %2007 = vmatprep.subr.mxu0 0.0
    %2008 = vmatpush2.msra.mxu0 0.0
    %2009 = vmatprep.subr.mxu0 0.0
    %2010 = vmatpush2.msra.mxu0 0.0
    %2011 = vmatprep.subr.mxu0 0.0
    %2012 = vmatpush2.msra.mxu0 0.0
    %2013 = vmatprep.subr.mxu0 0.0
    %2014 = vmatpush2.msra.mxu0 0.0
    %2015 = vmatprep.subr.mxu0 0.0
    %2016 = vmatpush2.msra.mxu0 0.0
    %2017 = vmatprep.mubr.f32.mxu0 0.0
    %2018 = vmatmul.mubr.f32.gmra.mxu0 %v1951
    %v2019 = vpop.f32.mrf.mxu0
    %v2020 = vadd.f32 0.0, %v2019
    %v2021 = vpop.f32.mrf.mxu0
    %v2022 = vadd.f32 0.0, %v2021
    %2023 = vdwg.mxu0
    %v2024 = vadd.f32 %v1339, %v2020
    %v2025 = vadd.f32 %v1340, %v2022
    %v2026 = vtanh.pop %v2024
    %v2027 = vtanh.pop %v2025
    %v2028 = vmul.f32 %v2026, 0.5
    %v2029 = vmul.f32 %v2027, 0.5
    %v2030 = vadd.f32 %v2028, 0.5
    %v2031 = vadd.f32 %v2029, 0.5
    %v2032 = vmul.f32 %v2030, %v1943
    %2034 = vrot.lane.b32.xlu0 %v2027, 64
    %v2035 = vpop.permute.xlu0 %2034
    %v2037 = vmul.f32 %v2030, %v2035
    %2039 = vrot.lane.b32.xlu0 %v2037, 64
    %v2040 = vpop.permute.xlu0 %2039
    %v2042 = vadd.f32 %v2032, %v2040
    %v2043 = vtanh.pop %v2042
    %2045 = vrot.lane.b32.xlu0 %v2043, 64
    %v2046 = vpop.permute.xlu0 %2045
    %v2048 = vmul.f32 %v2031, %v2046
    %v2050 = vsel %vm261, %v2048, 0
    %2052 = vmatprep.subr.mxu0 0.0
    %2053 = vmatpush1.msra.mxu0 0.0
    %2054 = vmatprep.subr.mxu0 0.0
    %2055 = vmatpush1.msra.mxu0 0.0
    %2056 = vmatprep.subr.mxu0 0.0
    %2057 = vmatpush1.msra.mxu0 0.0
    %2058 = vmatprep.subr.mxu0 0.0
    %2059 = vmatpush1.msra.mxu0 0.0
    %2060 = vmatprep.subr.mxu0 0.0
    %2061 = vmatpush1.msra.mxu0 0.0
    %2062 = vmatprep.subr.mxu0 0.0
    %2063 = vmatpush1.msra.mxu0 0.0
    %2064 = vmatprep.subr.mxu0 0.0
    %2065 = vmatpush1.msra.mxu0 0.0
    %2066 = vmatprep.subr.mxu0 0.0
    %2067 = vmatpush1.msra.mxu0 0.0
    %2068 = vmatprep.subr.mxu0 %v1358
    %2069 = vmatpush1.msra.mxu0 %v1357
    %2070 = vmatprep.subr.mxu0 %v1356
    %2071 = vmatpush1.msra.mxu0 %v1355
    %2072 = vmatprep.subr.mxu0 %v1354
    %2073 = vmatpush1.msra.mxu0 %v1353
    %2074 = vmatprep.subr.mxu0 %v1352
    %2075 = vmatpush1.msra.mxu0 %v1351
    %2076 = vmatprep.subr.mxu0 %v1350
    %2077 = vmatpush1.msra.mxu0 %v1349
    %2078 = vmatprep.subr.mxu0 %v1348
    %2079 = vmatpush1.msra.mxu0 %v1347
    %2080 = vmatprep.subr.mxu0 %v1346
    %2081 = vmatpush1.msra.mxu0 %v1345
    %2082 = vmatprep.subr.mxu0 %v1344
    %2083 = vmatpush1.msra.mxu0 %v1343
    %2084 = vmatprep.subr.mxu0 0.0
    %2085 = vmatpush2.msra.mxu0 0.0
    %2086 = vmatprep.subr.mxu0 0.0
    %2087 = vmatpush2.msra.mxu0 0.0
    %2088 = vmatprep.subr.mxu0 0.0
    %2089 = vmatpush2.msra.mxu0 0.0
    %2090 = vmatprep.subr.mxu0 0.0
    %2091 = vmatpush2.msra.mxu0 0.0
    %2092 = vmatprep.subr.mxu0 0.0
    %2093 = vmatpush2.msra.mxu0 0.0
    %2094 = vmatprep.subr.mxu0 0.0
    %2095 = vmatpush2.msra.mxu0 0.0
    %2096 = vmatprep.subr.mxu0 0.0
    %2097 = vmatpush2.msra.mxu0 0.0
    %2098 = vmatprep.subr.mxu0 0.0
    %2099 = vmatpush2.msra.mxu0 0.0
    %2100 = vmatprep.subr.mxu0 0.0
    %2101 = vmatpush2.msra.mxu0 0.0
    %2102 = vmatprep.subr.mxu0 0.0
    %2103 = vmatpush2.msra.mxu0 0.0
    %2104 = vmatprep.subr.mxu0 0.0
    %2105 = vmatpush2.msra.mxu0 0.0
    %2106 = vmatprep.subr.mxu0 0.0
    %2107 = vmatpush2.msra.mxu0 0.0
    %2108 = vmatprep.subr.mxu0 0.0
    %2109 = vmatpush2.msra.mxu0 0.0
    %2110 = vmatprep.subr.mxu0 0.0
    %2111 = vmatpush2.msra.mxu0 0.0
    %2112 = vmatprep.subr.mxu0 0.0
    %2113 = vmatpush2.msra.mxu0 0.0
    %2114 = vmatprep.subr.mxu0 0.0
    %2115 = vmatpush2.msra.mxu0 0.0
    %2116 = vmatprep.mubr.f32.mxu0 0.0
    %2117 = vmatmul.mubr.f32.gmra.mxu0 %v2050
    %v2118 = vpop.f32.mrf.mxu0
    %v2119 = vadd.f32 0.0, %v2118
    %v2120 = vpop.f32.mrf.mxu0
    %v2121 = vadd.f32 0.0, %v2120
    %2122 = vdwg.mxu0
    %v2123 = vadd.f32 %v1341, %v2119
    %v2124 = vadd.f32 %v1342, %v2121
    %v2125 = vtanh.pop %v2123
    %v2126 = vtanh.pop %v2124
    %v2127 = vmul.f32 %v2125, 0.5
    %v2128 = vmul.f32 %v2126, 0.5
    %v2129 = vadd.f32 %v2127, 0.5
    %v2130 = vadd.f32 %v2128, 0.5
    %v2131 = vmul.f32 %v2129, %v2042
    %2133 = vrot.lane.b32.xlu0 %v2126, 64
    %v2134 = vpop.permute.xlu0 %2133
    %v2136 = vmul.f32 %v2129, %v2134
    %2138 = vrot.lane.b32.xlu0 %v2136, 64
    %v2139 = vpop.permute.xlu0 %2138
    %v2141 = vadd.f32 %v2131, %v2139
    %v2142 = vtanh.pop %v2141
    %2144 = vrot.lane.b32.xlu0 %v2142, 64
    %v2145 = vpop.permute.xlu0 %2144
    %v2147 = vmul.f32 %v2130, %v2145
    %v2148 = vld [vmem:[#allocation4] sm:$0xff]
    %v2149 = vld [vmem:[#allocation4 + $0x8] sm:$0xff]
    %v2150 = vld [vmem:[#allocation4 + $0x10] sm:$0xff]
    %v2151 = vld [vmem:[#allocation4 + $0x18] sm:$0xff]
    %v2152 = vld [vmem:[#allocation4 + $0x20] sm:$0xff]
    %v2153 = vld [vmem:[#allocation4 + $0x28] sm:$0xff]
    %v2154 = vld [vmem:[#allocation4 + $0x30] sm:$0xff]
    %v2155 = vld [vmem:[#allocation4 + $0x38] sm:$0xff]
    %v2156 = vld [vmem:[#allocation6] sm:$0xff]
    %v2157 = vld [vmem:[#allocation6 + $0x8] sm:$0xff]
    %v2158 = vld [vmem:[#allocation6 + $0x10] sm:$0xff]
    %v2159 = vld [vmem:[#allocation6 + $0x18] sm:$0xff]
    %v2160 = vld [vmem:[#allocation6 + $0x20] sm:$0xff]
    %v2161 = vld [vmem:[#allocation6 + $0x28] sm:$0xff]
    %v2162 = vld [vmem:[#allocation6 + $0x30] sm:$0xff]
    %v2163 = vld [vmem:[#allocation6 + $0x38] sm:$0xff]
    %v2165 = vsel %vm261, %v2147, 0
    %2167 = vmatprep.subr.mxu0 0.0
    %2168 = vmatpush1.msra.mxu0 0.0
    %2169 = vmatprep.subr.mxu0 0.0
    %2170 = vmatpush1.msra.mxu0 0.0
    %2171 = vmatprep.subr.mxu0 0.0
    %2172 = vmatpush1.msra.mxu0 0.0
    %2173 = vmatprep.subr.mxu0 0.0
    %2174 = vmatpush1.msra.mxu0 0.0
    %2175 = vmatprep.subr.mxu0 0.0
    %2176 = vmatpush1.msra.mxu0 0.0
    %2177 = vmatprep.subr.mxu0 0.0
    %2178 = vmatpush1.msra.mxu0 0.0
    %2179 = vmatprep.subr.mxu0 0.0
    %2180 = vmatpush1.msra.mxu0 0.0
    %2181 = vmatprep.subr.mxu0 0.0
    %2182 = vmatpush1.msra.mxu0 0.0
    %2183 = vmatprep.subr.mxu0 0.0
    %2184 = vmatpush1.msra.mxu0 %v2163
    %2185 = vmatprep.subr.mxu0 0.0
    %2186 = vmatpush1.msra.mxu0 %v2162
    %2187 = vmatprep.subr.mxu0 0.0
    %2188 = vmatpush1.msra.mxu0 %v2161
    %2189 = vmatprep.subr.mxu0 0.0
    %2190 = vmatpush1.msra.mxu0 %v2160
    %2191 = vmatprep.subr.mxu0 0.0
    %2192 = vmatpush1.msra.mxu0 %v2159
    %2193 = vmatprep.subr.mxu0 0.0
    %2194 = vmatpush1.msra.mxu0 %v2158
    %2195 = vmatprep.subr.mxu0 0.0
    %2196 = vmatpush1.msra.mxu0 %v2157
    %2197 = vmatprep.subr.mxu0 0.0
    %2198 = vmatpush1.msra.mxu0 %v2156
    %2199 = vmatprep.subr.mxu0 0.0
    %2200 = vmatpush2.msra.mxu0 0.0
    %2201 = vmatprep.subr.mxu0 0.0
    %2202 = vmatpush2.msra.mxu0 0.0
    %2203 = vmatprep.subr.mxu0 0.0
    %2204 = vmatpush2.msra.mxu0 0.0
    %2205 = vmatprep.subr.mxu0 0.0
    %2206 = vmatpush2.msra.mxu0 0.0
    %2207 = vmatprep.subr.mxu0 0.0
    %2208 = vmatpush2.msra.mxu0 0.0
    %2209 = vmatprep.subr.mxu0 0.0
    %2210 = vmatpush2.msra.mxu0 0.0
    %2211 = vmatprep.subr.mxu0 0.0
    %2212 = vmatpush2.msra.mxu0 0.0
    %2213 = vmatprep.subr.mxu0 0.0
    %2214 = vmatpush2.msra.mxu0 0.0
    %2215 = vmatprep.subr.mxu0 0.0
    %2216 = vmatpush2.msra.mxu0 0.0
    %2217 = vmatprep.subr.mxu0 0.0
    %2218 = vmatpush2.msra.mxu0 0.0
    %2219 = vmatprep.subr.mxu0 0.0
    %2220 = vmatpush2.msra.mxu0 0.0
    %2221 = vmatprep.subr.mxu0 0.0
    %2222 = vmatpush2.msra.mxu0 0.0
    %2223 = vmatprep.subr.mxu0 0.0
    %2224 = vmatpush2.msra.mxu0 0.0
    %2225 = vmatprep.subr.mxu0 0.0
    %2226 = vmatpush2.msra.mxu0 0.0
    %2227 = vmatprep.subr.mxu0 0.0
    %2228 = vmatpush2.msra.mxu0 0.0
    %2229 = vmatprep.subr.mxu0 0.0
    %2230 = vmatpush2.msra.mxu0 0.0
    %2231 = vmatprep.mubr.f32.mxu0 0.0
    %2232 = vmatmul.mubr.f32.gmra.mxu0 %v2165
    %v2233 = vpop.f32.mrf.mxu0
    %v2234 = vadd.f32 0.0, %v2233
    %v2235 = vpop.f32.mrf.mxu0
    %2236 = vmatprep.mubr.f32.mxu0 0.0
    %2237 = vmatmul.mubr.f32.gmra.mxu0 %v2050
    %v2238 = vpop.f32.mrf.mxu0
    %v2239 = vadd.f32 0.0, %v2238
    %v2240 = vpop.f32.mrf.mxu0
    %2241 = vmatprep.mubr.f32.mxu0 0.0
    %2242 = vmatmul.mubr.f32.gmra.mxu0 %v1951
    %v2243 = vpop.f32.mrf.mxu0
    %v2244 = vadd.f32 0.0, %v2243
    %v2245 = vpop.f32.mrf.mxu0
    %2246 = vmatprep.mubr.f32.mxu0 0.0
    %2247 = vmatmul.mubr.f32.gmra.mxu0 %v1852
    %v2248 = vpop.f32.mrf.mxu0
    %v2249 = vadd.f32 0.0, %v2248
    %v2250 = vpop.f32.mrf.mxu0
    %2251 = vmatprep.mubr.f32.mxu0 0.0
    %2252 = vmatmul.mubr.f32.gmra.mxu0 %v1753
    %v2253 = vpop.f32.mrf.mxu0
    %v2254 = vadd.f32 0.0, %v2253
    %v2255 = vpop.f32.mrf.mxu0
    %2256 = vmatprep.mubr.f32.mxu0 0.0
    %2257 = vmatmul.mubr.f32.gmra.mxu0 %v1654
    %v2258 = vpop.f32.mrf.mxu0
    %v2259 = vadd.f32 0.0, %v2258
    %v2260 = vpop.f32.mrf.mxu0
    %2261 = vmatprep.mubr.f32.mxu0 0.0
    %2262 = vmatmul.mubr.f32.gmra.mxu0 %v1555
    %v2263 = vpop.f32.mrf.mxu0
    %v2264 = vadd.f32 0.0, %v2263
    %v2265 = vpop.f32.mrf.mxu0
    %2266 = vmatprep.mubr.f32.mxu0 0.0
    %2267 = vmatmul.mubr.f32.gmra.mxu0 %v1456
    %v2268 = vpop.f32.mrf.mxu0
    %v2269 = vadd.f32 0.0, %v2268
    %v2270 = vpop.f32.mrf.mxu0
    %2271 = vdwg.mxu0
    %2272 = vmatprep.subr.mxu0 0.0
    %2273 = vmatpush1.msra.mxu0 0.0
    %2274 = vmatprep.subr.mxu0 0.0
    %2275 = vmatpush1.msra.mxu0 0.0
    %2276 = vmatprep.subr.mxu0 0.0
    %2277 = vmatpush1.msra.mxu0 0.0
    %2278 = vmatprep.subr.mxu0 0.0
    %2279 = vmatpush1.msra.mxu0 0.0
    %2280 = vmatprep.subr.mxu0 0.0
    %2281 = vmatpush1.msra.mxu0 0.0
    %2282 = vmatprep.subr.mxu0 0.0
    %2283 = vmatpush1.msra.mxu0 0.0
    %2284 = vmatprep.subr.mxu0 0.0
    %2285 = vmatpush1.msra.mxu0 0.0
    %2286 = vmatprep.subr.mxu0 0.0
    %2287 = vmatpush1.msra.mxu0 0.0
    %2288 = vmatprep.subr.mxu0 0.0
    %2289 = vmatpush1.msra.mxu0 %v2155
    %2290 = vmatprep.subr.mxu0 0.0
    %2291 = vmatpush1.msra.mxu0 %v2154
    %2292 = vmatprep.subr.mxu0 0.0
    %2293 = vmatpush1.msra.mxu0 %v2153
    %2294 = vmatprep.subr.mxu0 0.0
    %2295 = vmatpush1.msra.mxu0 %v2152
    %2296 = vmatprep.subr.mxu0 0.0
    %2297 = vmatpush1.msra.mxu0 %v2151
    %2298 = vmatprep.subr.mxu0 0.0
    %2299 = vmatpush1.msra.mxu0 %v2150
    %2300 = vmatprep.subr.mxu0 0.0
    %2301 = vmatpush1.msra.mxu0 %v2149
    %2302 = vmatprep.subr.mxu0 0.0
    %2303 = vmatpush1.msra.mxu0 %v2148
    %2304 = vmatprep.subr.mxu0 0.0
    %2305 = vmatpush2.msra.mxu0 0.0
    %2306 = vmatprep.subr.mxu0 0.0
    %2307 = vmatpush2.msra.mxu0 0.0
    %2308 = vmatprep.subr.mxu0 0.0
    %2309 = vmatpush2.msra.mxu0 0.0
    %2310 = vmatprep.subr.mxu0 0.0
    %2311 = vmatpush2.msra.mxu0 0.0
    %2312 = vmatprep.subr.mxu0 0.0
    %2313 = vmatpush2.msra.mxu0 0.0
    %2314 = vmatprep.subr.mxu0 0.0
    %2315 = vmatpush2.msra.mxu0 0.0
    %2316 = vmatprep.subr.mxu0 0.0
    %2317 = vmatpush2.msra.mxu0 0.0
    %2318 = vmatprep.subr.mxu0 0.0
    %2319 = vmatpush2.msra.mxu0 0.0
    %2320 = vmatprep.subr.mxu0 0.0
    %2321 = vmatpush2.msra.mxu0 0.0
    %2322 = vmatprep.subr.mxu0 0.0
    %2323 = vmatpush2.msra.mxu0 0.0
    %2324 = vmatprep.subr.mxu0 0.0
    %2325 = vmatpush2.msra.mxu0 0.0
    %2326 = vmatprep.subr.mxu0 0.0
    %2327 = vmatpush2.msra.mxu0 0.0
    %2328 = vmatprep.subr.mxu0 0.0
    %2329 = vmatpush2.msra.mxu0 0.0
    %2330 = vmatprep.subr.mxu0 0.0
    %2331 = vmatpush2.msra.mxu0 0.0
    %2332 = vmatprep.subr.mxu0 0.0
    %2333 = vmatpush2.msra.mxu0 0.0
    %2334 = vmatprep.subr.mxu0 0.0
    %2335 = vmatpush2.msra.mxu0 0.0
    %2336 = vmatprep.mubr.f32.mxu0 0.0
    %2337 = vmatmul.mubr.f32.gmra.mxu0 %v1456
    %v2338 = vpop.f32.mrf.mxu0
    %v2339 = vadd.f32 %v2234, %v2338
    %v2340 = vpop.f32.mrf.mxu0
    %2341 = vmatprep.mubr.f32.mxu0 0.0
    %2342 = vmatmul.mubr.f32.gmra.mxu0 %v1555
    %v2343 = vpop.f32.mrf.mxu0
    %v2344 = vadd.f32 %v2239, %v2343
    %v2345 = vpop.f32.mrf.mxu0
    %2346 = vmatprep.mubr.f32.mxu0 0.0
    %2347 = vmatmul.mubr.f32.gmra.mxu0 %v1654
    %v2348 = vpop.f32.mrf.mxu0
    %v2349 = vadd.f32 %v2244, %v2348
    %v2350 = vpop.f32.mrf.mxu0
    %2351 = vmatprep.mubr.f32.mxu0 0.0
    %2352 = vmatmul.mubr.f32.gmra.mxu0 %v1753
    %v2353 = vpop.f32.mrf.mxu0
    %v2354 = vadd.f32 %v2249, %v2353
    %v2355 = vpop.f32.mrf.mxu0
    %2356 = vmatprep.mubr.f32.mxu0 0.0
    %2357 = vmatmul.mubr.f32.gmra.mxu0 %v1852
    %v2358 = vpop.f32.mrf.mxu0
    %v2359 = vadd.f32 %v2254, %v2358
    %v2360 = vpop.f32.mrf.mxu0
    %2361 = vmatprep.mubr.f32.mxu0 0.0
    %2362 = vmatmul.mubr.f32.gmra.mxu0 %v1951
    %v2363 = vpop.f32.mrf.mxu0
    %v2364 = vadd.f32 %v2259, %v2363
    %v2365 = vpop.f32.mrf.mxu0
    %2366 = vmatprep.mubr.f32.mxu0 0.0
    %2367 = vmatmul.mubr.f32.gmra.mxu0 %v2050
    %v2368 = vpop.f32.mrf.mxu0
    %v2369 = vadd.f32 %v2264, %v2368
    %v2370 = vpop.f32.mrf.mxu0
    %2371 = vmatprep.mubr.f32.mxu0 0.0
    %2372 = vmatmul.mubr.f32.gmra.mxu0 %v2165
    %v2373 = vpop.f32.mrf.mxu0
    %v2374 = vadd.f32 %v2269, %v2373
    %v2375 = vpop.f32.mrf.mxu0
    %2376 = vdwg.mxu0
    %v2377 = vld [vmem:[%s10] sm:$0x1]
    %v2379 = vlaneseq
    %v2380 = vshrl.u32 %v2379, 7
    %v2381 = vsub.s32 0, %v2380
    %v2382 = vrot.slane %v2377, %v2381
    %v2384 = vadd.f32 %v2339, %v2382
    %v2385 = vadd.f32 %v2344, %v2382
    %v2386 = vadd.f32 %v2349, %v2382
    %v2387 = vadd.f32 %v2354, %v2382
    %v2388 = vadd.f32 %v2359, %v2382
    %v2389 = vadd.f32 %v2364, %v2382
    %v2390 = vadd.f32 %v2369, %v2382
    %v2391 = vadd.f32 %v2374, %v2382
    %2392 = vst [vmem:[%s11] sm:$0xff] %v2384
    %2393 = vst [vmem:[%s11 + $0x8] sm:$0xff] %v2385
    %2394 = vst [vmem:[%s11 + $0x10] sm:$0xff] %v2386
    %2395 = vst [vmem:[%s11 + $0x18] sm:$0xff] %v2387
    %2396 = vst [vmem:[%s11 + $0x20] sm:$0xff] %v2388
    %2397 = vst [vmem:[%s11 + $0x28] sm:$0xff] %v2389
    %2398 = vst [vmem:[%s11 + $0x30] sm:$0xff] %v2390
    %2399 = vst [vmem:[%s11 + $0x38] sm:$0xff] %v2391
    // Predicated region
    $region58: #{rnnocr_forward.1} parent=1 // pred_check
      _
    $region59: #{rnnocr_forward.1} parent=1 // pred_check_branch
      %2401 = sbr.rel (0) target = $region61
    $region60: #{rnnocr_forward.1} parent=1 // pred_region
      _
    $region61: #{rnnocr_forward.1} parent=1 // pred_fallthru
      _
    // Predicated region
    $region62: #{rnnocr_forward.1} parent=1 // pred_check
      _
    $region63: #{rnnocr_forward.1} parent=1 // pred_check_branch
      %2403 = sbr.rel (0) target = $region65
    $region64: #{rnnocr_forward.1} parent=1 // pred_region
      _
    $region65: #{rnnocr_forward.1} parent=1 // pred_fallthru
      _
    %2404 = vsyncpa [#allocation3], 1
    %2405 = vsyncpa [#allocation5], 1

</llo_original>
